<compile_context>
chip_gen: v7x
topology: tpu7x:2x2x1
jax: 0.10.0
libtpu: 0.0.40
codegen_flags: <defaults>
</compile_context>

<pallas_src>
import jax
import jax.numpy as jnp
from jax.experimental import pallas as pl
from jax.experimental.pallas import tpu as pltpu

# ---------------------------------------------------------------------------
# Small synthetic config (channel counts fixed by the module, spatial scaled).
# ---------------------------------------------------------------------------
B = 2
C_IN = 3
IMG = 32                          # input resolution (224 in the original use)

C1, K1, S1, P1 = 64, 7, 2, 3      # Conv2d(3, 64, k=7, s=2, p=3)
KP, SP, PADP = 3, 2, 1            # MaxPool2d(k=3, s=2, p=1)
C2, K2, S2, P2 = 128, 3, 2, 1     # Conv2d(64, 128, k=3, s=2, p=1)

OH1 = (IMG + 2 * P1 - K1) // S1 + 1     # 16
OH2 = (OH1 + 2 * PADP - KP) // SP + 1   # 8
OH3 = (OH2 + 2 * P2 - K2) // S2 + 1     # 4
KK1 = K1 * K1 * C_IN                    # 147 = im2col depth of conv1
KK2 = K2 * K2 * C1                      # 576 = im2col depth of conv2


# ---------------------------------------------------------------------------
# In-kernel helpers (traced inside the Pallas kernel; all static slices,
# static concats and leading-dim reshapes — no dynamic indexing).
# ---------------------------------------------------------------------------
def _pad_hw_zero(x):
    """Zero-pad an [H, W, C] value by 1 on each spatial side."""
    h, w, c = x.shape
    zc = jnp.zeros((h, 1, c), x.dtype)
    x = jnp.concatenate([zc, x, zc], axis=1)
    zr = jnp.zeros((1, w + 2, c), x.dtype)
    return jnp.concatenate([zr, x, zr], axis=0)


def _pick_rows(x, start, step=2):
    """x[start::step] along axis 0 via a leading-dim reshape (no relayout)."""
    h, w, c = x.shape
    return x.reshape(h // step, step, w, c)[:, start, :, :]


def _pick_cols(x, start, step=2):
    """x[:, start::step] via static column slices + concat."""
    h, w, c = x.shape
    return jnp.concatenate([x[:, j:j + 1, :] for j in range(start, w, step)],
                           axis=1)


# ---------------------------------------------------------------------------
# Fused kernel: conv1 -> fm0, ReLU+maxpool -> fm1, conv2 -> fm2, ReLU -> fm3.
# Processes one batch element per grid step (grid axis is "parallel").
# ---------------------------------------------------------------------------
def _encoder_kernel(p1_ref, w1_ref, b1_ref, w2_ref, b2_ref,
                    fm0_ref, fm1_ref, fm2_ref, fm3_ref):
    f32 = jnp.float32

    # ---- Conv2d(3, 64, k=7, s=2, p=3): one im2col MXU matmul (pre-ReLU = fm0)
    y1 = jnp.dot(p1_ref[...], w1_ref[...], preferred_element_type=f32)
    y1 = (y1 + b1_ref[...]).reshape(OH1, OH1, C1)             # [16, 16, 64]
    fm0_ref[...] = y1

    # ---- ReLU + MaxPool2d(k=3, s=2, p=1) -> fm1
    x1 = jnp.maximum(y1, 0.0)
    # Zero padding equals PyTorch's -inf pool padding here: the pool input is
    # post-ReLU (>= 0) and every window contains at least one real element.
    xp = _pad_hw_zero(x1)                                      # [18, 18, 64]
    m = xp[0:OH1, 0:OH1, :]
    for kh in range(KP):
        for kw in range(KP):
            if kh == 0 and kw == 0:
                continue
            m = jnp.maximum(m, xp[kh:kh + OH1, kw:kw + OH1, :])
    m = _pick_cols(_pick_rows(m, 0), 0)                        # stride-2 pick -> [8, 8, 64]
    fm1_ref[...] = m

    # ---- Conv2d(64, 128, k=3, s=2, p=1): single stride-2 im2col MXU matmul.
    # Split the padded pool output once into its even/odd row/col subgrids so
    # every stride-2 tap (kh, kw) is a plain static slice of one subgrid.
    p2 = _pad_hw_zero(m)                                       # [10, 10, 64]
    rows = [_pick_rows(p2, a) for a in range(S2)]              # even/odd rows [5,10,64]
    grids = [[_pick_cols(r, b) for b in range(S2)] for r in rows]   # 4 x [5,5,64]
    taps = []
    for kh in range(K2):
        for kw in range(K2):
            g = grids[kh % S2][kw % S2]
            r0, c0 = kh // S2, kw // S2
            taps.append(g[r0:r0 + OH3, c0:c0 + OH3, :].reshape(OH3 * OH3, C1))
    patches2 = jnp.concatenate(taps, axis=-1)                  # [16, 576]
    y2 = jnp.dot(patches2, w2_ref[...], preferred_element_type=f32)
    y2 = (y2 + b2_ref[...]).reshape(OH3, OH3, C2)              # [4, 4, 128]
    fm2_ref[...] = y2                                          # pre-ReLU conv2
    fm3_ref[...] = jnp.maximum(y2, 0.0)                        # ReLU(conv2)


# ---------------------------------------------------------------------------
# Wrapper: layout plumbing only (NCHW<->NHWC, conv1 im2col, weight reshapes).
# ---------------------------------------------------------------------------
def custom_encoder_forward(x, params):
    """x: [B, 3, IMG, IMG] NCHW. Returns CustomEncoder's 4 feature maps (NCHW)."""
    bsz = x.shape[0]

    # NCHW -> NHWC so channels sit on the TPU lane axis, then build the conv1
    # im2col matrix once in the wrapper (XLA strided slices = layout plumbing).
    x_nhwc = jnp.transpose(x, (0, 2, 3, 1))
    xpad = jnp.pad(x_nhwc, ((0, 0), (P1, P1), (P1, P1), (0, 0)))
    cols = []
    for kh in range(K1):
        for kw in range(K1):
            cols.append(xpad[:, kh:kh + S1 * OH1:S1, kw:kw + S1 * OH1:S1, :])
    patches = jnp.concatenate(cols, axis=-1)                   # [B, 16, 16, 147]
    patches = patches.reshape(bsz, OH1 * OH1, KK1)

    # Torch-layout (OIHW) weights -> matmul layouts; K ordered as (kh, kw, c_in).
    w1m = jnp.transpose(params["w1"], (2, 3, 1, 0)).reshape(KK1, C1)
    b1m = params["b1"].reshape(1, C1)
    w2m = jnp.transpose(params["w2"], (2, 3, 1, 0)).reshape(KK2, C2)
    b2m = params["b2"].reshape(1, C2)

    fm0, fm1, fm2, fm3 = pl.pallas_call(
        _encoder_kernel,
        grid=(bsz,),
        in_specs=[
            pl.BlockSpec((None, OH1 * OH1, KK1), lambda i: (i, 0, 0)),
            pl.BlockSpec((KK1, C1), lambda i: (0, 0)),
            pl.BlockSpec((1, C1), lambda i: (0, 0)),
            pl.BlockSpec((KK2, C2), lambda i: (0, 0)),
            pl.BlockSpec((1, C2), lambda i: (0, 0)),
        ],
        out_specs=(
            pl.BlockSpec((None, OH1, OH1, C1), lambda i: (i, 0, 0, 0)),
            pl.BlockSpec((None, OH2, OH2, C1), lambda i: (i, 0, 0, 0)),
            pl.BlockSpec((None, OH3, OH3, C2), lambda i: (i, 0, 0, 0)),
            pl.BlockSpec((None, OH3, OH3, C2), lambda i: (i, 0, 0, 0)),
        ),
        out_shape=(
            jax.ShapeDtypeStruct((bsz, OH1, OH1, C1), jnp.float32),
            jax.ShapeDtypeStruct((bsz, OH2, OH2, C1), jnp.float32),
            jax.ShapeDtypeStruct((bsz, OH3, OH3, C2), jnp.float32),
            jax.ShapeDtypeStruct((bsz, OH3, OH3, C2), jnp.float32),
        ),
        compiler_params=pltpu.CompilerParams(
            dimension_semantics=("parallel",)),
    )(patches, w1m, b1m, w2m, b2m)

    to_nchw = lambda t: jnp.transpose(t, (0, 3, 1, 2))
    return [to_nchw(fm0), to_nchw(fm1), to_nchw(fm2), to_nchw(fm3)]


# ---------------------------------------------------------------------------
# Deterministic synthetic parameters (PyTorch OIHW layout) and pure-JAX ref.
# ---------------------------------------------------------------------------
def init_params(key):
    k1, k2, k3, k4 = jax.random.split(key, 4)
    w = lambda k, shape: (0.05 * jax.random.normal(k, shape)).astype(jnp.float32)
    return {
        "w1": w(k1, (C1, C_IN, K1, K1)),
        "b1": w(k2, (C1,)),
        "w2": w(k3, (C2, C1, K2, K2)),
        "b2": w(k4, (C2,)),
    }


def reference_forward(x, params):
    """Pure-JAX (XLA) reference of CustomEncoder.forward for validation."""
    hp = jax.lax.Precision.HIGHEST
    y = jax.lax.conv_general_dilated(
        x, params["w1"], window_strides=(S1, S1), padding=((P1, P1), (P1, P1)),
        dimension_numbers=("NCHW", "OIHW", "NCHW"), precision=hp)
    fm0 = y + params["b1"].reshape(1, C1, 1, 1)
    y = jnp.maximum(fm0, 0.0)
    fm1 = jax.lax.reduce_window(
        y, -jnp.inf, jax.lax.max, window_dimensions=(1, 1, KP, KP),
        window_strides=(1, 1, SP, SP),
        padding=((0, 0), (0, 0), (PADP, PADP), (PADP, PADP)))
    y = jax.lax.conv_general_dilated(
        fm1, params["w2"], window_strides=(S2, S2), padding=((P2, P2), (P2, P2)),
        dimension_numbers=("NCHW", "OIHW", "NCHW"), precision=hp)
    fm2 = y + params["b2"].reshape(1, C2, 1, 1)
    fm3 = jnp.maximum(fm2, 0.0)
    return [fm0, fm1, fm2, fm3]


if __name__ == "__main__":
    key = jax.random.PRNGKey(0)
    params = init_params(key)
    x = jax.random.normal(jax.random.fold_in(key, 7), (B, C_IN, IMG, IMG),
                          jnp.float32)

    fwd = jax.jit(custom_encoder_forward)
    feats = fwd(x, params)
    jax.block_until_ready(feats)

    refs = reference_forward(x, params)
    expected_shapes = [(B, C1, OH1, OH1), (B, C1, OH2, OH2),
                       (B, C2, OH3, OH3), (B, C2, OH3, OH3)]
    for got, ref, shp in zip(feats, refs, expected_shapes):
        assert got.shape == shp and got.dtype == jnp.float32
        assert bool(jnp.all(jnp.isfinite(got)))
        err = float(jnp.max(jnp.abs(got - ref)))
        assert err < 3e-2, f"mismatch vs reference: max abs err {err}"
    print("KERNEL_OK")
</pallas_src>

<mosaic_0001>
module attributes {stable_mosaic.version = 11 : i64} {
  func.func @_encoder_kernel(%arg0: i32, %arg1: memref<1x256x147xf32, #tpu.memory_space<vmem>>, %arg2: memref<147x64xf32, #tpu.memory_space<vmem>>, %arg3: memref<1x64xf32, #tpu.memory_space<vmem>>, %arg4: memref<576x128xf32, #tpu.memory_space<vmem>>, %arg5: memref<1x128xf32, #tpu.memory_space<vmem>>, %arg6: memref<1x16x16x64xf32, #tpu.memory_space<vmem>>, %arg7: memref<1x8x8x64xf32, #tpu.memory_space<vmem>>, %arg8: memref<1x4x4x128xf32, #tpu.memory_space<vmem>>, %arg9: memref<1x4x4x128xf32, #tpu.memory_space<vmem>>) attributes {dimension_semantics = [#tpu.dimension_semantics<parallel>], iteration_bounds = array<i64: 2>, scalar_prefetch = 0 : i64, scratch_operands = 0 : i64, tpu.core_type = #tpu.core_type<tc>, window_params = [{transform_indices = @transform_0, window_bounds = array<i64: 1, 256, 147>}, {pipeline_mode = #tpu.pipeline_mode<synchronous>, transform_indices = @transform_1, window_bounds = array<i64: 147, 64>}, {pipeline_mode = #tpu.pipeline_mode<synchronous>, transform_indices = @transform_2, window_bounds = array<i64: 1, 64>}, {pipeline_mode = #tpu.pipeline_mode<synchronous>, transform_indices = @transform_3, window_bounds = array<i64: 576, 128>}, {pipeline_mode = #tpu.pipeline_mode<synchronous>, transform_indices = @transform_4, window_bounds = array<i64: 1, 128>}, {transform_indices = @transform_5, window_bounds = array<i64: 1, 16, 16, 64>}, {transform_indices = @transform_6, window_bounds = array<i64: 1, 8, 8, 64>}, {transform_indices = @transform_7, window_bounds = array<i64: 1, 4, 4, 128>}, {transform_indices = @transform_8, window_bounds = array<i64: 1, 4, 4, 128>}]} {
    %c0 = arith.constant 0 : index
    %c0_0 = arith.constant 0 : index
    %c0_1 = arith.constant 0 : index
    %0 = vector.load %arg1[%c0, %c0_0, %c0_1] : memref<1x256x147xf32, #tpu.memory_space<vmem>>, vector<1x256x147xf32>
    %1 = vector.shape_cast %0 : vector<1x256x147xf32> to vector<256x147xf32>
    %c0_2 = arith.constant 0 : index
    %c0_3 = arith.constant 0 : index
    %2 = vector.load %arg2[%c0_2, %c0_3] : memref<147x64xf32, #tpu.memory_space<vmem>>, vector<147x64xf32>
    %cst = arith.constant dense<0.000000e+00> : vector<256x64xf32>
    %3 = tpu.matmul %1, %2, %cst {dimension_numbers = #tpu.dot_dimension_numbers<[1], [0], [0], [1], [0, 0, 1, 1], [], []>} : vector<256x147xf32>, vector<147x64xf32>, vector<256x64xf32> -> vector<256x64xf32>
    %c0_4 = arith.constant 0 : index
    %c0_5 = arith.constant 0 : index
    %4 = vector.load %arg3[%c0_4, %c0_5] : memref<1x64xf32, #tpu.memory_space<vmem>>, vector<1x64xf32>
    %5 = vector.broadcast %4 : vector<1x64xf32> to vector<256x64xf32>
    %6 = arith.addf %3, %5 : vector<256x64xf32>
    %7 = vector.shape_cast %6 : vector<256x64xf32> to vector<16x16x64xf32>
    %c0_6 = arith.constant 0 : index
    %c0_7 = arith.constant 0 : index
    %c0_8 = arith.constant 0 : index
    %c0_9 = arith.constant 0 : index
    %8 = vector.load %arg6[%c0_6, %c0_7, %c0_8, %c0_9] : memref<1x16x16x64xf32, #tpu.memory_space<vmem>>, vector<1x16x16x64xf32>
    %9 = vector.shape_cast %8 : vector<1x16x16x64xf32> to vector<16x16x64xf32>
    %10 = vector.shape_cast %7 : vector<16x16x64xf32> to vector<1x16x16x64xf32>
    tpu.vector_store %arg6[%c0_6, %c0_7, %c0_8, %c0_9], %10 {strides = array<i32>} : memref<1x16x16x64xf32, #tpu.memory_space<vmem>>, vector<1x16x16x64xf32>,
    %cst_10 = arith.constant 0.000000e+00 : f32
    %11 = vector.broadcast %cst_10 : f32 to vector<16x16x64xf32>
    %12 = arith.maximumf %7, %11 : vector<16x16x64xf32>
    %cst_11 = arith.constant 0.000000e+00 : f32
    %13 = vector.broadcast %cst_11 : f32 to vector<16x1x64xf32>
    %14 = tpu.concatenate %13, %12, %13 in 1 : vector<16x1x64xf32>, vector<16x16x64xf32>, vector<16x1x64xf32> -> vector<16x18x64xf32>
    %cst_12 = arith.constant 0.000000e+00 : f32
    %15 = vector.broadcast %cst_12 : f32 to vector<1x18x64xf32>
    %16 = tpu.concatenate %15, %14, %15 in 0 : vector<1x18x64xf32>, vector<16x18x64xf32>, vector<1x18x64xf32> -> vector<18x18x64xf32>
    %17 = vector.extract_strided_slice %16 {offsets = [0, 0, 0], sizes = [16, 16, 64], strides = [1, 1, 1]} : vector<18x18x64xf32> to vector<16x16x64xf32>
    %18 = vector.extract_strided_slice %16 {offsets = [0, 1, 0], sizes = [16, 16, 64], strides = [1, 1, 1]} : vector<18x18x64xf32> to vector<16x16x64xf32>
    %19 = arith.maximumf %17, %18 : vector<16x16x64xf32>
    %20 = vector.extract_strided_slice %16 {offsets = [0, 2, 0], sizes = [16, 16, 64], strides = [1, 1, 1]} : vector<18x18x64xf32> to vector<16x16x64xf32>
    %21 = arith.maximumf %19, %20 : vector<16x16x64xf32>
    %22 = vector.extract_strided_slice %16 {offsets = [1, 0, 0], sizes = [16, 16, 64], strides = [1, 1, 1]} : vector<18x18x64xf32> to vector<16x16x64xf32>
    %23 = arith.maximumf %21, %22 : vector<16x16x64xf32>
    %24 = vector.extract_strided_slice %16 {offsets = [1, 1, 0], sizes = [16, 16, 64], strides = [1, 1, 1]} : vector<18x18x64xf32> to vector<16x16x64xf32>
    %25 = arith.maximumf %23, %24 : vector<16x16x64xf32>
    %26 = vector.extract_strided_slice %16 {offsets = [1, 2, 0], sizes = [16, 16, 64], strides = [1, 1, 1]} : vector<18x18x64xf32> to vector<16x16x64xf32>
    %27 = arith.maximumf %25, %26 : vector<16x16x64xf32>
    %28 = vector.extract_strided_slice %16 {offsets = [2, 0, 0], sizes = [16, 16, 64], strides = [1, 1, 1]} : vector<18x18x64xf32> to vector<16x16x64xf32>
    %29 = arith.maximumf %27, %28 : vector<16x16x64xf32>
    %30 = vector.extract_strided_slice %16 {offsets = [2, 1, 0], sizes = [16, 16, 64], strides = [1, 1, 1]} : vector<18x18x64xf32> to vector<16x16x64xf32>
    %31 = arith.maximumf %29, %30 : vector<16x16x64xf32>
    %32 = vector.extract_strided_slice %16 {offsets = [2, 2, 0], sizes = [16, 16, 64], strides = [1, 1, 1]} : vector<18x18x64xf32> to vector<16x16x64xf32>
    %33 = arith.maximumf %31, %32 : vector<16x16x64xf32>
    %34 = vector.shape_cast %33 : vector<16x16x64xf32> to vector<8x2x16x64xf32>
    %35 = vector.extract_strided_slice %34 {offsets = [0, 0, 0, 0], sizes = [8, 1, 16, 64], strides = [1, 1, 1, 1]} : vector<8x2x16x64xf32> to vector<8x1x16x64xf32>
    %36 = vector.shape_cast %35 : vector<8x1x16x64xf32> to vector<8x16x64xf32>
    %37 = vector.extract_strided_slice %36 {offsets = [0, 0, 0], sizes = [8, 1, 64], strides = [1, 1, 1]} : vector<8x16x64xf32> to vector<8x1x64xf32>
    %38 = vector.extract_strided_slice %36 {offsets = [0, 2, 0], sizes = [8, 1, 64], strides = [1, 1, 1]} : vector<8x16x64xf32> to vector<8x1x64xf32>
    %39 = vector.extract_strided_slice %36 {offsets = [0, 4, 0], sizes = [8, 1, 64], strides = [1, 1, 1]} : vector<8x16x64xf32> to vector<8x1x64xf32>
    %40 = vector.extract_strided_slice %36 {offsets = [0, 6, 0], sizes = [8, 1, 64], strides = [1, 1, 1]} : vector<8x16x64xf32> to vector<8x1x64xf32>
    %41 = vector.extract_strided_slice %36 {offsets = [0, 8, 0], sizes = [8, 1, 64], strides = [1, 1, 1]} : vector<8x16x64xf32> to vector<8x1x64xf32>
    %42 = vector.extract_strided_slice %36 {offsets = [0, 10, 0], sizes = [8, 1, 64], strides = [1, 1, 1]} : vector<8x16x64xf32> to vector<8x1x64xf32>
    %43 = vector.extract_strided_slice %36 {offsets = [0, 12, 0], sizes = [8, 1, 64], strides = [1, 1, 1]} : vector<8x16x64xf32> to vector<8x1x64xf32>
    %44 = vector.extract_strided_slice %36 {offsets = [0, 14, 0], sizes = [8, 1, 64], strides = [1, 1, 1]} : vector<8x16x64xf32> to vector<8x1x64xf32>
    %45 = tpu.concatenate %37, %38, %39, %40, %41, %42, %43, %44 in 1 : vector<8x1x64xf32>, vector<8x1x64xf32>, vector<8x1x64xf32>, vector<8x1x64xf32>, vector<8x1x64xf32>, vector<8x1x64xf32>, vector<8x1x64xf32>, vector<8x1x64xf32> -> vector<8x8x64xf32>
    %c0_13 = arith.constant 0 : index
    %c0_14 = arith.constant 0 : index
    %c0_15 = arith.constant 0 : index
    %c0_16 = arith.constant 0 : index
    %46 = vector.load %arg7[%c0_13, %c0_14, %c0_15, %c0_16] : memref<1x8x8x64xf32, #tpu.memory_space<vmem>>, vector<1x8x8x64xf32>
    %47 = vector.shape_cast %46 : vector<1x8x8x64xf32> to vector<8x8x64xf32>
    %48 = vector.shape_cast %45 : vector<8x8x64xf32> to vector<1x8x8x64xf32>
    tpu.vector_store %arg7[%c0_13, %c0_14, %c0_15, %c0_16], %48 {strides = array<i32>} : memref<1x8x8x64xf32, #tpu.memory_space<vmem>>, vector<1x8x8x64xf32>,
    %cst_17 = arith.constant 0.000000e+00 : f32
    %49 = vector.broadcast %cst_17 : f32 to vector<8x1x64xf32>
    %50 = tpu.concatenate %49, %45, %49 in 1 : vector<8x1x64xf32>, vector<8x8x64xf32>, vector<8x1x64xf32> -> vector<8x10x64xf32>
    %cst_18 = arith.constant 0.000000e+00 : f32
    %51 = vector.broadcast %cst_18 : f32 to vector<1x10x64xf32>
    %52 = tpu.concatenate %51, %50, %51 in 0 : vector<1x10x64xf32>, vector<8x10x64xf32>, vector<1x10x64xf32> -> vector<10x10x64xf32>
    %53 = vector.shape_cast %52 : vector<10x10x64xf32> to vector<5x2x10x64xf32>
    %54 = vector.extract_strided_slice %53 {offsets = [0, 0, 0, 0], sizes = [5, 1, 10, 64], strides = [1, 1, 1, 1]} : vector<5x2x10x64xf32> to vector<5x1x10x64xf32>
    %55 = vector.shape_cast %54 : vector<5x1x10x64xf32> to vector<5x10x64xf32>
    %56 = vector.shape_cast %52 : vector<10x10x64xf32> to vector<5x2x10x64xf32>
    %57 = vector.extract_strided_slice %56 {offsets = [0, 1, 0, 0], sizes = [5, 1, 10, 64], strides = [1, 1, 1, 1]} : vector<5x2x10x64xf32> to vector<5x1x10x64xf32>
    %58 = vector.shape_cast %57 : vector<5x1x10x64xf32> to vector<5x10x64xf32>
    %59 = vector.extract_strided_slice %55 {offsets = [0, 0, 0], sizes = [5, 1, 64], strides = [1, 1, 1]} : vector<5x10x64xf32> to vector<5x1x64xf32>
    %60 = vector.extract_strided_slice %55 {offsets = [0, 2, 0], sizes = [5, 1, 64], strides = [1, 1, 1]} : vector<5x10x64xf32> to vector<5x1x64xf32>
    %61 = vector.extract_strided_slice %55 {offsets = [0, 4, 0], sizes = [5, 1, 64], strides = [1, 1, 1]} : vector<5x10x64xf32> to vector<5x1x64xf32>
    %62 = vector.extract_strided_slice %55 {offsets = [0, 6, 0], sizes = [5, 1, 64], strides = [1, 1, 1]} : vector<5x10x64xf32> to vector<5x1x64xf32>
    %63 = vector.extract_strided_slice %55 {offsets = [0, 8, 0], sizes = [5, 1, 64], strides = [1, 1, 1]} : vector<5x10x64xf32> to vector<5x1x64xf32>
    %64 = tpu.concatenate %59, %60, %61, %62, %63 in 1 : vector<5x1x64xf32>, vector<5x1x64xf32>, vector<5x1x64xf32>, vector<5x1x64xf32>, vector<5x1x64xf32> -> vector<5x5x64xf32>
    %65 = vector.extract_strided_slice %55 {offsets = [0, 1, 0], sizes = [5, 1, 64], strides = [1, 1, 1]} : vector<5x10x64xf32> to vector<5x1x64xf32>
    %66 = vector.extract_strided_slice %55 {offsets = [0, 3, 0], sizes = [5, 1, 64], strides = [1, 1, 1]} : vector<5x10x64xf32> to vector<5x1x64xf32>
    %67 = vector.extract_strided_slice %55 {offsets = [0, 5, 0], sizes = [5, 1, 64], strides = [1, 1, 1]} : vector<5x10x64xf32> to vector<5x1x64xf32>
    %68 = vector.extract_strided_slice %55 {offsets = [0, 7, 0], sizes = [5, 1, 64], strides = [1, 1, 1]} : vector<5x10x64xf32> to vector<5x1x64xf32>
    %69 = vector.extract_strided_slice %55 {offsets = [0, 9, 0], sizes = [5, 1, 64], strides = [1, 1, 1]} : vector<5x10x64xf32> to vector<5x1x64xf32>
    %70 = tpu.concatenate %65, %66, %67, %68, %69 in 1 : vector<5x1x64xf32>, vector<5x1x64xf32>, vector<5x1x64xf32>, vector<5x1x64xf32>, vector<5x1x64xf32> -> vector<5x5x64xf32>
    %71 = vector.extract_strided_slice %58 {offsets = [0, 0, 0], sizes = [5, 1, 64], strides = [1, 1, 1]} : vector<5x10x64xf32> to vector<5x1x64xf32>
    %72 = vector.extract_strided_slice %58 {offsets = [0, 2, 0], sizes = [5, 1, 64], strides = [1, 1, 1]} : vector<5x10x64xf32> to vector<5x1x64xf32>
    %73 = vector.extract_strided_slice %58 {offsets = [0, 4, 0], sizes = [5, 1, 64], strides = [1, 1, 1]} : vector<5x10x64xf32> to vector<5x1x64xf32>
    %74 = vector.extract_strided_slice %58 {offsets = [0, 6, 0], sizes = [5, 1, 64], strides = [1, 1, 1]} : vector<5x10x64xf32> to vector<5x1x64xf32>
    %75 = vector.extract_strided_slice %58 {offsets = [0, 8, 0], sizes = [5, 1, 64], strides = [1, 1, 1]} : vector<5x10x64xf32> to vector<5x1x64xf32>
    %76 = tpu.concatenate %71, %72, %73, %74, %75 in 1 : vector<5x1x64xf32>, vector<5x1x64xf32>, vector<5x1x64xf32>, vector<5x1x64xf32>, vector<5x1x64xf32> -> vector<5x5x64xf32>
    %77 = vector.extract_strided_slice %58 {offsets = [0, 1, 0], sizes = [5, 1, 64], strides = [1, 1, 1]} : vector<5x10x64xf32> to vector<5x1x64xf32>
    %78 = vector.extract_strided_slice %58 {offsets = [0, 3, 0], sizes = [5, 1, 64], strides = [1, 1, 1]} : vector<5x10x64xf32> to vector<5x1x64xf32>
    %79 = vector.extract_strided_slice %58 {offsets = [0, 5, 0], sizes = [5, 1, 64], strides = [1, 1, 1]} : vector<5x10x64xf32> to vector<5x1x64xf32>
    %80 = vector.extract_strided_slice %58 {offsets = [0, 7, 0], sizes = [5, 1, 64], strides = [1, 1, 1]} : vector<5x10x64xf32> to vector<5x1x64xf32>
    %81 = vector.extract_strided_slice %58 {offsets = [0, 9, 0], sizes = [5, 1, 64], strides = [1, 1, 1]} : vector<5x10x64xf32> to vector<5x1x64xf32>
    %82 = tpu.concatenate %77, %78, %79, %80, %81 in 1 : vector<5x1x64xf32>, vector<5x1x64xf32>, vector<5x1x64xf32>, vector<5x1x64xf32>, vector<5x1x64xf32> -> vector<5x5x64xf32>
    %83 = vector.extract_strided_slice %64 {offsets = [0, 0, 0], sizes = [4, 4, 64], strides = [1, 1, 1]} : vector<5x5x64xf32> to vector<4x4x64xf32>
    %84 = vector.shape_cast %83 : vector<4x4x64xf32> to vector<16x64xf32>
    %85 = vector.extract_strided_slice %70 {offsets = [0, 0, 0], sizes = [4, 4, 64], strides = [1, 1, 1]} : vector<5x5x64xf32> to vector<4x4x64xf32>
    %86 = vector.shape_cast %85 : vector<4x4x64xf32> to vector<16x64xf32>
    %87 = vector.extract_strided_slice %64 {offsets = [0, 1, 0], sizes = [4, 4, 64], strides = [1, 1, 1]} : vector<5x5x64xf32> to vector<4x4x64xf32>
    %88 = vector.shape_cast %87 : vector<4x4x64xf32> to vector<16x64xf32>
    %89 = vector.extract_strided_slice %76 {offsets = [0, 0, 0], sizes = [4, 4, 64], strides = [1, 1, 1]} : vector<5x5x64xf32> to vector<4x4x64xf32>
    %90 = vector.shape_cast %89 : vector<4x4x64xf32> to vector<16x64xf32>
    %91 = vector.extract_strided_slice %82 {offsets = [0, 0, 0], sizes = [4, 4, 64], strides = [1, 1, 1]} : vector<5x5x64xf32> to vector<4x4x64xf32>
    %92 = vector.shape_cast %91 : vector<4x4x64xf32> to vector<16x64xf32>
    %93 = vector.extract_strided_slice %76 {offsets = [0, 1, 0], sizes = [4, 4, 64], strides = [1, 1, 1]} : vector<5x5x64xf32> to vector<4x4x64xf32>
    %94 = vector.shape_cast %93 : vector<4x4x64xf32> to vector<16x64xf32>
    %95 = vector.extract_strided_slice %64 {offsets = [1, 0, 0], sizes = [4, 4, 64], strides = [1, 1, 1]} : vector<5x5x64xf32> to vector<4x4x64xf32>
    %96 = vector.shape_cast %95 : vector<4x4x64xf32> to vector<16x64xf32>
    %97 = vector.extract_strided_slice %70 {offsets = [1, 0, 0], sizes = [4, 4, 64], strides = [1, 1, 1]} : vector<5x5x64xf32> to vector<4x4x64xf32>
    %98 = vector.shape_cast %97 : vector<4x4x64xf32> to vector<16x64xf32>
    %99 = vector.extract_strided_slice %64 {offsets = [1, 1, 0], sizes = [4, 4, 64], strides = [1, 1, 1]} : vector<5x5x64xf32> to vector<4x4x64xf32>
    %100 = vector.shape_cast %99 : vector<4x4x64xf32> to vector<16x64xf32>
    %101 = tpu.concatenate %84, %86, %88, %90, %92, %94, %96, %98, %100 in 1 : vector<16x64xf32>, vector<16x64xf32>, vector<16x64xf32>, vector<16x64xf32>, vector<16x64xf32>, vector<16x64xf32>, vector<16x64xf32>, vector<16x64xf32>, vector<16x64xf32> -> vector<16x576xf32>
    %c0_19 = arith.constant 0 : index
    %c0_20 = arith.constant 0 : index
    %102 = vector.load %arg4[%c0_19, %c0_20] : memref<576x128xf32, #tpu.memory_space<vmem>>, vector<576x128xf32>
    %cst_21 = arith.constant dense<0.000000e+00> : vector<16x128xf32>
    %103 = tpu.matmul %101, %102, %cst_21 {dimension_numbers = #tpu.dot_dimension_numbers<[1], [0], [0], [1], [0, 0, 1, 1], [], []>} : vector<16x576xf32>, vector<576x128xf32>, vector<16x128xf32> -> vector<16x128xf32>
    %c0_22 = arith.constant 0 : index
    %c0_23 = arith.constant 0 : index
    %104 = vector.load %arg5[%c0_22, %c0_23] : memref<1x128xf32, #tpu.memory_space<vmem>>, vector<1x128xf32>
    %105 = vector.broadcast %104 : vector<1x128xf32> to vector<16x128xf32>
    %106 = arith.addf %103, %105 : vector<16x128xf32>
    %107 = vector.shape_cast %106 : vector<16x128xf32> to vector<4x4x128xf32>
    %c0_24 = arith.constant 0 : index
    %c0_25 = arith.constant 0 : index
    %c0_26 = arith.constant 0 : index
    %c0_27 = arith.constant 0 : index
    %108 = vector.load %arg8[%c0_24, %c0_25, %c0_26, %c0_27] : memref<1x4x4x128xf32, #tpu.memory_space<vmem>>, vector<1x4x4x128xf32>
    %109 = vector.shape_cast %108 : vector<1x4x4x128xf32> to vector<4x4x128xf32>
    %110 = vector.shape_cast %107 : vector<4x4x128xf32> to vector<1x4x4x128xf32>
    tpu.vector_store %arg8[%c0_24, %c0_25, %c0_26, %c0_27], %110 {strides = array<i32>} : memref<1x4x4x128xf32, #tpu.memory_space<vmem>>, vector<1x4x4x128xf32>,
    %cst_28 = arith.constant 0.000000e+00 : f32
    %111 = vector.broadcast %cst_28 : f32 to vector<4x4x128xf32>
    %112 = arith.maximumf %107, %111 : vector<4x4x128xf32>
    %c0_29 = arith.constant 0 : index
    %c0_30 = arith.constant 0 : index
    %c0_31 = arith.constant 0 : index
    %c0_32 = arith.constant 0 : index
    %113 = vector.load %arg9[%c0_29, %c0_30, %c0_31, %c0_32] : memref<1x4x4x128xf32, #tpu.memory_space<vmem>>, vector<1x4x4x128xf32>
    %114 = vector.shape_cast %113 : vector<1x4x4x128xf32> to vector<4x4x128xf32>
    %115 = vector.shape_cast %112 : vector<4x4x128xf32> to vector<1x4x4x128xf32>
    tpu.vector_store %arg9[%c0_29, %c0_30, %c0_31, %c0_32], %115 {strides = array<i32>} : memref<1x4x4x128xf32, #tpu.memory_space<vmem>>, vector<1x4x4x128xf32>,
    return
  }
  func.func @transform_0(%arg0: i32) -> (i32, i32, i32) {
    %c0_i32 = arith.constant 0 : i32
    %c0_i32_0 = arith.constant 0 : i32
    %c0_i32_1 = arith.constant 0 : i32
    return %arg0, %c0_i32, %c0_i32_0 : i32, i32, i32
  }
  func.func @transform_1(%arg0: i32) -> (i32, i32) {
    %c0_i32 = arith.constant 0 : i32
    %c0_i32_0 = arith.constant 0 : i32
    %c0_i32_1 = arith.constant 0 : i32
    return %c0_i32, %c0_i32_0 : i32, i32
  }
  func.func @transform_2(%arg0: i32) -> (i32, i32) {
    %c0_i32 = arith.constant 0 : i32
    %c0_i32_0 = arith.constant 0 : i32
    %c0_i32_1 = arith.constant 0 : i32
    return %c0_i32, %c0_i32_0 : i32, i32
  }
  func.func @transform_3(%arg0: i32) -> (i32, i32) {
    %c0_i32 = arith.constant 0 : i32
    %c0_i32_0 = arith.constant 0 : i32
    %c0_i32_1 = arith.constant 0 : i32
    return %c0_i32, %c0_i32_0 : i32, i32
  }
  func.func @transform_4(%arg0: i32) -> (i32, i32) {
    %c0_i32 = arith.constant 0 : i32
    %c0_i32_0 = arith.constant 0 : i32
    %c0_i32_1 = arith.constant 0 : i32
    return %c0_i32, %c0_i32_0 : i32, i32
  }
  func.func @transform_5(%arg0: i32) -> (i32, i32, i32, i32) {
    %c0_i32 = arith.constant 0 : i32
    %c0_i32_0 = arith.constant 0 : i32
    %c0_i32_1 = arith.constant 0 : i32
    %c0_i32_2 = arith.constant 0 : i32
    return %arg0, %c0_i32, %c0_i32_0, %c0_i32_1 : i32, i32, i32, i32
  }
  func.func @transform_6(%arg0: i32) -> (i32, i32, i32, i32) {
    %c0_i32 = arith.constant 0 : i32
    %c0_i32_0 = arith.constant 0 : i32
    %c0_i32_1 = arith.constant 0 : i32
    %c0_i32_2 = arith.constant 0 : i32
    return %arg0, %c0_i32, %c0_i32_0, %c0_i32_1 : i32, i32, i32, i32
  }
  func.func @transform_7(%arg0: i32) -> (i32, i32, i32, i32) {
    %c0_i32 = arith.constant 0 : i32
    %c0_i32_0 = arith.constant 0 : i32
    %c0_i32_1 = arith.constant 0 : i32
    %c0_i32_2 = arith.constant 0 : i32
    return %arg0, %c0_i32, %c0_i32_0, %c0_i32_1 : i32, i32, i32, i32
  }
  func.func @transform_8(%arg0: i32) -> (i32, i32, i32, i32) {
    %c0_i32 = arith.constant 0 : i32
    %c0_i32_0 = arith.constant 0 : i32
    %c0_i32_1 = arith.constant 0 : i32
    %c0_i32_2 = arith.constant 0 : i32
    return %arg0, %c0_i32, %c0_i32_0, %c0_i32_1 : i32, i32, i32, i32
  }
}

</mosaic_0001>

<llo_original>
// kernel: custom_encoder_forward.1
$region0: #{custom_encoder_forward.1}
  #allocation0 [shape = 'u32[]', space=smem, size = 0x4, offset = 0x4, fixed_abs, tag = 'smem constant byte address 0x4 - core index']
  #allocation1 [shape = 'u32[144,128]{1,0:T(1,128)}', space=vmem, size = 0x12000, scoped, tag = 'internal scratch']
  %s0 = inlined_call_operand.vmem [shape: f32[2,256,147], index: 0, kind: input, shape index: {}]
  %s1 = inlined_call_operand.vmem [shape: f32[147,64], index: 1, kind: input, shape index: {}]
  %s2 = inlined_call_operand.vmem [shape: f32[1,64], index: 2, kind: input, shape index: {}]
  %s3 = inlined_call_operand.vmem [shape: f32[576,128], index: 3, kind: input, shape index: {}]
  %s4 = inlined_call_operand.vmem [shape: f32[1,128], index: 4, kind: input, shape index: {}]
  %s5 = inlined_call_operand.hbm [shape: f32[2,16,16,64], index: 5, kind: output, shape index: {0}]
  %s6 = inlined_call_operand.hbm [shape: f32[2,8,8,64], index: 6, kind: output, shape index: {1}]
  %s7 = inlined_call_operand.hbm [shape: f32[2,4,4,128], index: 7, kind: output, shape index: {2}]
  %s8 = inlined_call_operand.hbm [shape: f32[2,4,4,128], index: 8, kind: output, shape index: {3}]
  %9 = xla_tuple %s5, %s6, %s7, %s8
  %s10 = sld [smem:[#allocation0]]
  $region77: #{custom_encoder_forward.1} parent=0
    _
  %s12 = ssub.s32 1, %s10
  %s13 = scalar_select 0, %s12, %s10
  $region1: #{custom_encoder_forward.1} parent=0
    #allocation2 [shape = 'u8[262144]{0}', space=vmem, size = 0x40000, scoped, tag = 'output window, operand 0']
    #allocation3 [shape = 's32[2]{0}', space=sflag, size = 0x8, scoped, tag = 'scoped memory for custom_encoder_forward.1']
    #allocation4 [shape = 'u8[65536]{0}', space=vmem, size = 0x10000, scoped, tag = 'output window, operand 1']
    #allocation5 [shape = 's32[2]{0}', space=sflag, size = 0x8, scoped, tag = 'scoped memory for custom_encoder_forward.1']
    #allocation6 [shape = 'u8[16384]{0}', space=vmem, size = 0x4000, scoped, tag = 'output window, operand 2']
    #allocation7 [shape = 'u8[16384]{0}', space=vmem, size = 0x4000, scoped, tag = 'output window, operand 3']
    #allocation8 [shape = 's32[2]{0}', space=sflag, size = 0x8, scoped, tag = 'scoped memory for custom_encoder_forward.1']
    %14 = vsyncpa [#allocation3], 0
    %s15 = scalar_lea.sflag [#allocation3], 1
    %16 = vsyncpa %s15, 0
    %17 = vsyncpa [#allocation5], 0
    %s18 = scalar_lea.sflag [#allocation5], 1
    %19 = vsyncpa %s18, 0
    %20 = vsyncpa [#allocation8], 0
    %s21 = scalar_lea.sflag [#allocation8], 1
    %22 = vsyncpa %s21, 0
    loop: start=0, step=1, limit=4
    $region2: #{custom_encoder_forward.1} parent=1 // loop_pre_header
      _
    $region3: #{custom_encoder_forward.1} parent=1 // loop_header
      %s24 = sphi 0, %s28
      %p25 = scmp.ge.s32.totalorder %s24, 4
      %s34 = sphi 0, %s36
      %s37 = sphi 0, %s34
      %s38 = sphi 0, %s37
      %s54 = sphi 0, %s38
      %s58 = sphi 0, %s58
      %s60 = sphi 0, %s58
      %s61 = sphi 0, %s60
      %s75 = sphi 0, %s61
      %s79 = sphi 0, %s79
      %s81 = sphi 0, %s79
      %s82 = sphi 0, %s81
      %s96 = sphi 0, %s82
      %s100 = sphi 0, %s100
      %s102 = sphi 0, %s100
      %s103 = sphi 0, %s102
      %s117 = sphi 0, %s103
      %s121 = sphi 0, %s121
      %s123 = sphi 0, %s121
      %s124 = sphi 0, %s123
      %s138 = sphi 0, %s124
      %s144 = sphi 0, %s146
      %s147 = sphi 0, %s144
      %s148 = sphi 0, %s147
      %s164 = sphi 0, %s148
      %s170 = sphi 0, %s172
      %s173 = sphi 0, %s170
      %s174 = sphi 0, %s173
      %s190 = sphi 0, %s174
      %s196 = sphi 0, %s198
      %s199 = sphi 0, %s196
      %s200 = sphi 0, %s199
      %s216 = sphi 0, %s200
      %s222 = sphi 0, %s224
      %s225 = sphi 0, %s222
      %s226 = sphi 0, %s225
      %s242 = sphi 0, %s226
    $region4: #{custom_encoder_forward.1} parent=1 // loop_header_branch
      %27 = sbr.rel (%p25) target = $region8
    $region5: #{custom_encoder_forward.1} parent=1 // loop_body
      %s29 = ssub.s32 %s24, 1
      %s30 = ssub.s32 %s24, 2
      %s31 = sadd.s32 %s24, 1
      %s32 = ssub.s32 %s24, %s31
      %p33 = scmp.eq.s32.totalorder %s32, 0
      %s35 = sadd.s32 %s34, 1
      %s36 = scalar_select %p33, %s34, %s35
      %p39 = pneg %p33
      %p40 = scmp.eq.s32.totalorder %s24, 1
      %p41 = por %p39, %p40
      %p42 = scmp.ne.s32.totalorder %s34, %s37
      %p43 = scmp.eq.s32.totalorder %s24, 0
      %p44 = por %p42, %p43
      %p45 = scmp.ne.s32.totalorder %s34, %s37
      %p46 = scmp.eq.s32.totalorder %s29, 1
      %p47 = por %p45, %p46
      %p48 = scmp.ne.s32.totalorder %s37, %s38
      %p49 = scmp.eq.s32.totalorder %s29, 0
      %p50 = por %p48, %p49
      %p51 = scmp.ne.s32.totalorder %s37, %s38
      %p52 = scmp.eq.s32.totalorder %s30, 1
      %p53 = por %p51, %p52
      %p55 = scmp.ne.s32.totalorder %s38, %s54
      %p56 = scmp.eq.s32.totalorder %s30, 0
      %p57 = por %p55, %p56
      %s59 = sadd.s32 %s58, 1
      %p62 = scmp.eq.s32.totalorder %s24, 1
      %p63 = scmp.ne.s32.totalorder %s58, %s60
      %p64 = scmp.eq.s32.totalorder %s24, 0
      %p65 = por %p63, %p64
      %p66 = scmp.ne.s32.totalorder %s58, %s60
      %p67 = scmp.eq.s32.totalorder %s29, 1
      %p68 = por %p66, %p67
      %p69 = scmp.ne.s32.totalorder %s60, %s61
      %p70 = scmp.eq.s32.totalorder %s29, 0
      %p71 = por %p69, %p70
      %p72 = scmp.ne.s32.totalorder %s60, %s61
      %p73 = scmp.eq.s32.totalorder %s30, 1
      %p74 = por %p72, %p73
      %p76 = scmp.ne.s32.totalorder %s61, %s75
      %p77 = scmp.eq.s32.totalorder %s30, 0
      %p78 = por %p76, %p77
      %s80 = sadd.s32 %s79, 1
      %p83 = scmp.eq.s32.totalorder %s24, 1
      %p84 = scmp.ne.s32.totalorder %s79, %s81
      %p85 = scmp.eq.s32.totalorder %s24, 0
      %p86 = por %p84, %p85
      %p87 = scmp.ne.s32.totalorder %s79, %s81
      %p88 = scmp.eq.s32.totalorder %s29, 1
      %p89 = por %p87, %p88
      %p90 = scmp.ne.s32.totalorder %s81, %s82
      %p91 = scmp.eq.s32.totalorder %s29, 0
      %p92 = por %p90, %p91
      %p93 = scmp.ne.s32.totalorder %s81, %s82
      %p94 = scmp.eq.s32.totalorder %s30, 1
      %p95 = por %p93, %p94
      %p97 = scmp.ne.s32.totalorder %s82, %s96
      %p98 = scmp.eq.s32.totalorder %s30, 0
      %p99 = por %p97, %p98
      %s101 = sadd.s32 %s100, 1
      %p104 = scmp.eq.s32.totalorder %s24, 1
      %p105 = scmp.ne.s32.totalorder %s100, %s102
      %p106 = scmp.eq.s32.totalorder %s24, 0
      %p107 = por %p105, %p106
      %p108 = scmp.ne.s32.totalorder %s100, %s102
      %p109 = scmp.eq.s32.totalorder %s29, 1
      %p110 = por %p108, %p109
      %p111 = scmp.ne.s32.totalorder %s102, %s103
      %p112 = scmp.eq.s32.totalorder %s29, 0
      %p113 = por %p111, %p112
      %p114 = scmp.ne.s32.totalorder %s102, %s103
      %p115 = scmp.eq.s32.totalorder %s30, 1
      %p116 = por %p114, %p115
      %p118 = scmp.ne.s32.totalorder %s103, %s117
      %p119 = scmp.eq.s32.totalorder %s30, 0
      %p120 = por %p118, %p119
      %s122 = sadd.s32 %s121, 1
      %p125 = scmp.eq.s32.totalorder %s24, 1
      %p126 = scmp.ne.s32.totalorder %s121, %s123
      %p127 = scmp.eq.s32.totalorder %s24, 0
      %p128 = por %p126, %p127
      %p129 = scmp.ne.s32.totalorder %s121, %s123
      %p130 = scmp.eq.s32.totalorder %s29, 1
      %p131 = por %p129, %p130
      %p132 = scmp.ne.s32.totalorder %s123, %s124
      %p133 = scmp.eq.s32.totalorder %s29, 0
      %p134 = por %p132, %p133
      %p135 = scmp.ne.s32.totalorder %s123, %s124
      %p136 = scmp.eq.s32.totalorder %s30, 1
      %p137 = por %p135, %p136
      %p139 = scmp.ne.s32.totalorder %s124, %s138
      %p140 = scmp.eq.s32.totalorder %s30, 0
      %p141 = por %p139, %p140
      %s142 = ssub.s32 %s24, %s31
      %p143 = scmp.eq.s32.totalorder %s142, 0
      %s145 = sadd.s32 %s144, 1
      %s146 = scalar_select %p143, %s144, %s145
      %p149 = pneg %p143
      %p150 = scmp.eq.s32.totalorder %s24, 1
      %p151 = por %p149, %p150
      %p152 = scmp.ne.s32.totalorder %s144, %s147
      %p153 = scmp.eq.s32.totalorder %s24, 0
      %p154 = por %p152, %p153
      %p155 = scmp.ne.s32.totalorder %s144, %s147
      %p156 = scmp.eq.s32.totalorder %s29, 1
      %p157 = por %p155, %p156
      %p158 = scmp.ne.s32.totalorder %s147, %s148
      %p159 = scmp.eq.s32.totalorder %s29, 0
      %p160 = por %p158, %p159
      %p161 = scmp.ne.s32.totalorder %s147, %s148
      %p162 = scmp.eq.s32.totalorder %s30, 1
      %p163 = por %p161, %p162
      %p165 = scmp.ne.s32.totalorder %s148, %s164
      %p166 = scmp.eq.s32.totalorder %s30, 0
      %p167 = por %p165, %p166
      %s168 = ssub.s32 %s24, %s31
      %p169 = scmp.eq.s32.totalorder %s168, 0
      %s171 = sadd.s32 %s170, 1
      %s172 = scalar_select %p169, %s170, %s171
      %p175 = pneg %p169
      %p176 = scmp.eq.s32.totalorder %s24, 1
      %p177 = por %p175, %p176
      %p178 = scmp.ne.s32.totalorder %s170, %s173
      %p179 = scmp.eq.s32.totalorder %s24, 0
      %p180 = por %p178, %p179
      %p181 = scmp.ne.s32.totalorder %s170, %s173
      %p182 = scmp.eq.s32.totalorder %s29, 1
      %p183 = por %p181, %p182
      %p184 = scmp.ne.s32.totalorder %s173, %s174
      %p185 = scmp.eq.s32.totalorder %s29, 0
      %p186 = por %p184, %p185
      %p187 = scmp.ne.s32.totalorder %s173, %s174
      %p188 = scmp.eq.s32.totalorder %s30, 1
      %p189 = por %p187, %p188
      %p191 = scmp.ne.s32.totalorder %s174, %s190
      %p192 = scmp.eq.s32.totalorder %s30, 0
      %p193 = por %p191, %p192
      %s194 = ssub.s32 %s24, %s31
      %p195 = scmp.eq.s32.totalorder %s194, 0
      %s197 = sadd.s32 %s196, 1
      %s198 = scalar_select %p195, %s196, %s197
      %p201 = pneg %p195
      %p202 = scmp.eq.s32.totalorder %s24, 1
      %p203 = por %p201, %p202
      %p204 = scmp.ne.s32.totalorder %s196, %s199
      %p205 = scmp.eq.s32.totalorder %s24, 0
      %p206 = por %p204, %p205
      %p207 = scmp.ne.s32.totalorder %s196, %s199
      %p208 = scmp.eq.s32.totalorder %s29, 1
      %p209 = por %p207, %p208
      %p210 = scmp.ne.s32.totalorder %s199, %s200
      %p211 = scmp.eq.s32.totalorder %s29, 0
      %p212 = por %p210, %p211
      %p213 = scmp.ne.s32.totalorder %s199, %s200
      %p214 = scmp.eq.s32.totalorder %s30, 1
      %p215 = por %p213, %p214
      %p217 = scmp.ne.s32.totalorder %s200, %s216
      %p218 = scmp.eq.s32.totalorder %s30, 0
      %p219 = por %p217, %p218
      %s220 = ssub.s32 %s24, %s31
      %p221 = scmp.eq.s32.totalorder %s220, 0
      %s223 = sadd.s32 %s222, 1
      %s224 = scalar_select %p221, %s222, %s223
      %p227 = pneg %p221
      %p228 = scmp.eq.s32.totalorder %s24, 1
      %p229 = por %p227, %p228
      %p230 = scmp.ne.s32.totalorder %s222, %s225
      %p231 = scmp.eq.s32.totalorder %s24, 0
      %p232 = por %p230, %p231
      %p233 = scmp.ne.s32.totalorder %s222, %s225
      %p234 = scmp.eq.s32.totalorder %s29, 1
      %p235 = por %p233, %p234
      %p236 = scmp.ne.s32.totalorder %s225, %s226
      %p237 = scmp.eq.s32.totalorder %s29, 0
      %p238 = por %p236, %p237
      %p239 = scmp.ne.s32.totalorder %s225, %s226
      %p240 = scmp.eq.s32.totalorder %s30, 1
      %p241 = por %p239, %p240
      %p243 = scmp.ne.s32.totalorder %s226, %s242
      %p244 = scmp.eq.s32.totalorder %s30, 0
      %p245 = por %p243, %p244
      %p246 = scmp.le.s32.totalorder 1, %s24
      %p247 = scmp.lt.s32.totalorder %s24, 3
      %p248 = pnand %p246, %p247
      %p249 = pneg %p248
      // Predicated region
      $region9: #{custom_encoder_forward.1} parent=5 // pred_check
        _
      $region10: #{custom_encoder_forward.1} parent=5 // pred_check_branch
        %251 = sbr.rel (%p248) target = $region12
      $region11: #{custom_encoder_forward.1} parent=5 // pred_region
        %s252 = ssub.s32 %s24, 1
        // Predicated region
        $region13: #{custom_encoder_forward.1} parent=11 // pred_check
          %p253 = pneg %p71
        $region14: #{custom_encoder_forward.1} parent=11 // pred_check_branch
          %255 = sbr.rel (%p253) target = $region16
        $region15: #{custom_encoder_forward.1} parent=11 // pred_region
          _
        $region16: #{custom_encoder_forward.1} parent=11 // pred_fallthru
          _
        // Predicated region
        $region17: #{custom_encoder_forward.1} parent=11 // pred_check
          %p256 = pneg %p92
        $region18: #{custom_encoder_forward.1} parent=11 // pred_check_branch
          %258 = sbr.rel (%p256) target = $region20
        $region19: #{custom_encoder_forward.1} parent=11 // pred_region
          _
        $region20: #{custom_encoder_forward.1} parent=11 // pred_fallthru
          _
        // Predicated region
        $region21: #{custom_encoder_forward.1} parent=11 // pred_check
          %p259 = pneg %p113
        $region22: #{custom_encoder_forward.1} parent=11 // pred_check_branch
          %261 = sbr.rel (%p259) target = $region24
        $region23: #{custom_encoder_forward.1} parent=11 // pred_region
          _
        $region24: #{custom_encoder_forward.1} parent=11 // pred_fallthru
          _
        // Predicated region
        $region25: #{custom_encoder_forward.1} parent=11 // pred_check
          %p262 = pneg %p134
        $region26: #{custom_encoder_forward.1} parent=11 // pred_check_branch
          %264 = sbr.rel (%p262) target = $region28
        $region27: #{custom_encoder_forward.1} parent=11 // pred_region
          _
        $region28: #{custom_encoder_forward.1} parent=11 // pred_fallthru
          _
      $region12: #{custom_encoder_forward.1} parent=5 // pred_fallthru
        _
      %p265 = scmp.lt.s32.totalorder %s24, 2
      // Predicated region
      $region29: #{custom_encoder_forward.1} parent=5 // pred_check
        %p266 = pneg %p265
      $region30: #{custom_encoder_forward.1} parent=5 // pred_check_branch
        %268 = sbr.rel (%p266) target = $region32
      $region31: #{custom_encoder_forward.1} parent=5 // pred_region
        // Predicated region
        $region33: #{custom_encoder_forward.1} parent=31 // pred_check
          %p269 = pneg %p44
        $region34: #{custom_encoder_forward.1} parent=31 // pred_check_branch
          %271 = sbr.rel (%p269) target = $region36
        $region35: #{custom_encoder_forward.1} parent=31 // pred_region
          %p272 = scmp.lt.s32.totalorder %s24, 1
          %s273 = scalar_select %p272, %s24, 1
          %s274 = smul.addr %s273, 64
          %s275 = smul.addr %s274, 8
          %s276 = scalar_lea.vmem %s0, %s275
        $region36: #{custom_encoder_forward.1} parent=31 // pred_fallthru
          _
      $region32: #{custom_encoder_forward.1} parent=5 // pred_fallthru
        _
      %p277 = scmp.le.s32.totalorder 1, %s24
      %p278 = scmp.lt.s32.totalorder %s24, 3
      %p279 = pnand %p277, %p278
      %p280 = pneg %p279
      // Predicated region
      $region37: #{custom_encoder_forward.1} parent=5 // pred_check
        _
      $region38: #{custom_encoder_forward.1} parent=5 // pred_check_branch
        %282 = sbr.rel (%p279) target = $region40
      $region39: #{custom_encoder_forward.1} parent=5 // pred_region
        %s283 = ssub.s32 %s24, 1
        %p284 = scmp.lt.s32.totalorder %s29, 1
        %s285 = scalar_select %p284, %s29, 1
        %s286 = smul.addr %s285, 64
        %s287 = smul.addr %s286, 8
        %s288 = scalar_lea.vmem %s0, %s287
        %p289 = pneg %p50
        %p290 = pneg %p47
        %p291 = pneg %p71
        %p292 = pneg %p68
        %p293 = pneg %p92
        %p294 = pneg %p89
        %p295 = pneg %p113
        %p296 = pneg %p110
        %p297 = pneg %p134
        %p298 = pneg %p131
        %p299 = pneg %p160
        %p300 = pneg %p157
        %s301 = sand.u32 %s147, 1
        %s302 = scalar_lea.sflag [#allocation3], %s301
        %s303 = sand.u32 %s147, 1
        %s304 = smul.addr %s303, 256
        %s305 = scalar_lea.vmem [#allocation2], %s304
        %p306 = pneg %p186
        %p307 = pneg %p183
        %s308 = sand.u32 %s29, 1
        %s309 = scalar_lea.sflag [#allocation5], %s308
        %s310 = sand.u32 %s173, 1
        %s311 = smul.addr %s310, 64
        %s312 = scalar_lea.vmem [#allocation4], %s311
        %p313 = pneg %p212
        %p314 = pneg %p209
        %s315 = sand.u32 %s29, 1
        %s316 = scalar_lea.sflag [#allocation5], %s315
        %s317 = sand.u32 %s199, 1
        %s318 = smul.addr %s317, 16
        %s319 = scalar_lea.vmem [#allocation6], %s318
        %p320 = pneg %p238
        %p321 = pneg %p235
        %s322 = sand.u32 %s225, 1
        %s323 = scalar_lea.sflag [#allocation8], %s322
        %s324 = sand.u32 %s225, 1
        %s325 = smul.addr %s324, 16
        %s326 = scalar_lea.vmem [#allocation7], %s325
        %p327 = scmp.lt.s32.totalorder %s29, 1
        %s328 = scalar_select %p327, %s29, 1
        %s329 = smul.addr %s328, 64
        %s330 = smul.addr %s329, 8
        %s331 = scalar_lea.vmem %s0, %s330
        %v332 = vld [vmem:[%s331] sm:$0xff]
        %v333 = vld [vmem:[%s331 + $0x8] sm:$0xff]
        %v334 = vld [vmem:[%s331 + $0x10] sm:$0xff]
        %v335 = vld [vmem:[%s331 + $0x18] sm:$0xff]
        %v336 = vld [vmem:[%s331 + $0x20] sm:$0xff]
        %v337 = vld [vmem:[%s331 + $0x28] sm:$0xff]
        %v338 = vld [vmem:[%s331 + $0x30] sm:$0xff]
        %v339 = vld [vmem:[%s331 + $0x38] sm:$0xff]
        %v340 = vld [vmem:[%s331 + $0x40] sm:$0xff]
        %v341 = vld [vmem:[%s331 + $0x48] sm:$0xff]
        %v342 = vld [vmem:[%s331 + $0x50] sm:$0xff]
        %v343 = vld [vmem:[%s331 + $0x58] sm:$0xff]
        %v344 = vld [vmem:[%s331 + $0x60] sm:$0xff]
        %v345 = vld [vmem:[%s331 + $0x68] sm:$0xff]
        %v346 = vld [vmem:[%s331 + $0x70] sm:$0xff]
        %v347 = vld [vmem:[%s331 + $0x78] sm:$0xff]
        %v348 = vld [vmem:[%s331 + $0x80] sm:$0xff]
        %v349 = vld [vmem:[%s331 + $0x88] sm:$0xff]
        %v350 = vld [vmem:[%s331 + $0x90] sm:$0xff]
        %v351 = vld [vmem:[%s331 + $0x98] sm:$0xff]
        %v352 = vld [vmem:[%s331 + $0xa0] sm:$0xff]
        %v353 = vld [vmem:[%s331 + $0xa8] sm:$0xff]
        %v354 = vld [vmem:[%s331 + $0xb0] sm:$0xff]
        %v355 = vld [vmem:[%s331 + $0xb8] sm:$0xff]
        %v356 = vld [vmem:[%s331 + $0xc0] sm:$0xff]
        %v357 = vld [vmem:[%s331 + $0xc8] sm:$0xff]
        %v358 = vld [vmem:[%s331 + $0xd0] sm:$0xff]
        %v359 = vld [vmem:[%s331 + $0xd8] sm:$0xff]
        %v360 = vld [vmem:[%s331 + $0xe0] sm:$0xff]
        %v361 = vld [vmem:[%s331 + $0xe8] sm:$0xff]
        %v362 = vld [vmem:[%s331 + $0xf0] sm:$0xff]
        %v363 = vld [vmem:[%s331 + $0xf8] sm:$0xff]
        %v364 = vld [vmem:[%s331 + $0x100] sm:$0xff]
        %v365 = vld [vmem:[%s331 + $0x108] sm:$0xff]
        %v366 = vld [vmem:[%s331 + $0x110] sm:$0xff]
        %v367 = vld [vmem:[%s331 + $0x118] sm:$0xff]
        %v368 = vld [vmem:[%s331 + $0x120] sm:$0xff]
        %v369 = vld [vmem:[%s331 + $0x128] sm:$0xff]
        %v370 = vld [vmem:[%s331 + $0x130] sm:$0xff]
        %v371 = vld [vmem:[%s331 + $0x138] sm:$0xff]
        %v372 = vld [vmem:[%s331 + $0x140] sm:$0xff]
        %v373 = vld [vmem:[%s331 + $0x148] sm:$0xff]
        %v374 = vld [vmem:[%s331 + $0x150] sm:$0xff]
        %v375 = vld [vmem:[%s331 + $0x158] sm:$0xff]
        %v376 = vld [vmem:[%s331 + $0x160] sm:$0xff]
        %v377 = vld [vmem:[%s331 + $0x168] sm:$0xff]
        %v378 = vld [vmem:[%s331 + $0x170] sm:$0xff]
        %v379 = vld [vmem:[%s331 + $0x178] sm:$0xff]
        %v380 = vld [vmem:[%s331 + $0x180] sm:$0xff]
        %v381 = vld [vmem:[%s331 + $0x188] sm:$0xff]
        %v382 = vld [vmem:[%s331 + $0x190] sm:$0xff]
        %v383 = vld [vmem:[%s331 + $0x198] sm:$0xff]
        %v384 = vld [vmem:[%s331 + $0x1a0] sm:$0xff]
        %v385 = vld [vmem:[%s331 + $0x1a8] sm:$0xff]
        %v386 = vld [vmem:[%s331 + $0x1b0] sm:$0xff]
        %v387 = vld [vmem:[%s331 + $0x1b8] sm:$0xff]
        %v388 = vld [vmem:[%s331 + $0x1c0] sm:$0xff]
        %v389 = vld [vmem:[%s331 + $0x1c8] sm:$0xff]
        %v390 = vld [vmem:[%s331 + $0x1d0] sm:$0xff]
        %v391 = vld [vmem:[%s331 + $0x1d8] sm:$0xff]
        %v392 = vld [vmem:[%s331 + $0x1e0] sm:$0xff]
        %v393 = vld [vmem:[%s331 + $0x1e8] sm:$0xff]
        %v394 = vld [vmem:[%s331 + $0x1f0] sm:$0xff]
        %v395 = vld [vmem:[%s331 + $0x1f8] sm:$0xff]
        %v396 = vld [vmem:[%s1] sm:$0xff]
        %v397 = vld [vmem:[%s1 + $0x8] sm:$0xff]
        %v398 = vld [vmem:[%s1 + $0x10] sm:$0xff]
        %v399 = vld [vmem:[%s1 + $0x18] sm:$0xff]
        %v400 = vld [vmem:[%s1 + $0x20] sm:$0xff]
        %v401 = vld [vmem:[%s1 + $0x28] sm:$0xff]
        %v402 = vld [vmem:[%s1 + $0x30] sm:$0xff]
        %v403 = vld [vmem:[%s1 + $0x38] sm:$0xff]
        %v404 = vld [vmem:[%s1 + $0x40] sm:$0xff]
        %v405 = vld [vmem:[%s1 + $0x48] sm:$0xff]
        %v406 = vld [vmem:[%s1 + $0x50] sm:$0xff]
        %v407 = vld [vmem:[%s1 + $0x58] sm:$0xff]
        %v408 = vld [vmem:[%s1 + $0x60] sm:$0xff]
        %v409 = vld [vmem:[%s1 + $0x68] sm:$0xff]
        %v410 = vld [vmem:[%s1 + $0x70] sm:$0xff]
        %v411 = vld [vmem:[%s1 + $0x78] sm:$0xff]
        %v412 = vld [vmem:[%s1 + $0x80] sm:$0xff]
        %v413 = vld [vmem:[%s1 + $0x88] sm:$0xff]
        %v414 = vld [vmem:[%s1 + $0x90] sm:$0x7]
        %v415 = vld [vmem:[%s2] sm:$0x1]
        %v417 = vlaneseq
        %v418 = vshrl.u32 %v417, 7
        %v419 = vsub.s32 0, %v418
        %v420 = vrot.slane %v415, %v419
        %vm422 = vcmask 154624
        %v424 = vsel %vm422, %v333, 0
        %v427 = vsel %vm422, %v335, 0
        %v430 = vsel %vm422, %v337, 0
        %v433 = vsel %vm422, %v339, 0
        %v436 = vsel %vm422, %v341, 0
        %v439 = vsel %vm422, %v343, 0
        %v442 = vsel %vm422, %v345, 0
        %v445 = vsel %vm422, %v347, 0
        %v448 = vsel %vm422, %v349, 0
        %v451 = vsel %vm422, %v351, 0
        %v454 = vsel %vm422, %v353, 0
        %v457 = vsel %vm422, %v355, 0
        %v460 = vsel %vm422, %v357, 0
        %v463 = vsel %vm422, %v359, 0
        %v466 = vsel %vm422, %v361, 0
        %v469 = vsel %vm422, %v363, 0
        %v472 = vsel %vm422, %v365, 0
        %v475 = vsel %vm422, %v367, 0
        %v478 = vsel %vm422, %v369, 0
        %v481 = vsel %vm422, %v371, 0
        %v484 = vsel %vm422, %v373, 0
        %v487 = vsel %vm422, %v375, 0
        %v490 = vsel %vm422, %v377, 0
        %v493 = vsel %vm422, %v379, 0
        %v496 = vsel %vm422, %v381, 0
        %v499 = vsel %vm422, %v383, 0
        %v502 = vsel %vm422, %v385, 0
        %v505 = vsel %vm422, %v387, 0
        %v508 = vsel %vm422, %v389, 0
        %v511 = vsel %vm422, %v391, 0
        %v514 = vsel %vm422, %v393, 0
        %v517 = vsel %vm422, %v395, 0
        %vm519 = vcmask 1042432
        %v521 = vsel %vm519, %v414, 0
        %523 = vmatprep.subr.mxu0 0.0
        %524 = vmatpush1.msra.mxu0 %v396
        %525 = vmatprep.subr.mxu0 0.0
        %526 = vmatpush1.msra.mxu0 %v397
        %527 = vmatprep.subr.mxu0 0.0
        %528 = vmatpush1.msra.mxu0 %v398
        %529 = vmatprep.subr.mxu0 0.0
        %530 = vmatpush1.msra.mxu0 %v399
        %531 = vmatprep.subr.mxu0 0.0
        %532 = vmatpush1.msra.mxu0 %v400
        %533 = vmatprep.subr.mxu0 0.0
        %534 = vmatpush1.msra.mxu0 %v401
        %535 = vmatprep.subr.mxu0 0.0
        %536 = vmatpush1.msra.mxu0 %v402
        %537 = vmatprep.subr.mxu0 0.0
        %538 = vmatpush1.msra.mxu0 %v403
        %539 = vmatprep.subr.mxu0 0.0
        %540 = vmatpush1.msra.mxu0 %v404
        %541 = vmatprep.subr.mxu0 0.0
        %542 = vmatpush1.msra.mxu0 %v405
        %543 = vmatprep.subr.mxu0 0.0
        %544 = vmatpush1.msra.mxu0 %v406
        %545 = vmatprep.subr.mxu0 0.0
        %546 = vmatpush1.msra.mxu0 %v407
        %547 = vmatprep.subr.mxu0 0.0
        %548 = vmatpush1.msra.mxu0 %v408
        %549 = vmatprep.subr.mxu0 0.0
        %550 = vmatpush1.msra.mxu0 %v409
        %551 = vmatprep.subr.mxu0 0.0
        %552 = vmatpush1.msra.mxu0 %v410
        %553 = vmatprep.subr.mxu0 0.0
        %554 = vmatpush1.msra.mxu0 %v411
        %555 = vmatprep.subr.mxu0 0.0
        %556 = vmatpush1.msra.mxu0 %v412
        %557 = vmatprep.subr.mxu0 0.0
        %558 = vmatpush1.msra.mxu0 %v413
        %559 = vmatprep.subr.mxu0 0.0
        %560 = vmatpush1.msra.mxu0 %v521
        %561 = vmatprep.subr.mxu0 0.0
        %562 = vmatpush1.msra.mxu0 0.0
        %563 = vmatprep.subr.mxu0 0.0
        %564 = vmatpush1.msra.mxu0 0.0
        %565 = vmatprep.subr.mxu0 0.0
        %566 = vmatpush1.msra.mxu0 0.0
        %567 = vmatprep.subr.mxu0 0.0
        %568 = vmatpush1.msra.mxu0 0.0
        %569 = vmatprep.subr.mxu0 0.0
        %570 = vmatpush1.msra.mxu0 0.0
        %571 = vmatprep.subr.mxu0 0.0
        %572 = vmatpush1.msra.mxu0 0.0
        %573 = vmatprep.subr.mxu0 0.0
        %574 = vmatpush1.msra.mxu0 0.0
        %575 = vmatprep.subr.mxu0 0.0
        %576 = vmatpush1.msra.mxu0 0.0
        %577 = vmatprep.subr.mxu0 0.0
        %578 = vmatpush1.msra.mxu0 0.0
        %579 = vmatprep.subr.mxu0 0.0
        %580 = vmatpush1.msra.mxu0 0.0
        %581 = vmatprep.subr.mxu0 0.0
        %582 = vmatpush1.msra.mxu0 0.0
        %583 = vmatprep.subr.mxu0 0.0
        %584 = vmatpush1.msra.mxu0 0.0
        %585 = vmatprep.subr.mxu0 0.0
        %586 = vmatpush1.msra.mxu0 0.0
        %587 = vmatprep.mubr.f32.mxu0 %v424
        %588 = vmatmul.mubr.f32.gmra.mrb[0].mxu0 %v332
        %v589 = vpop.f32.mrb[0].mxu0
        %v590 = vadd.f32 %v420, %v589
        %v591 = vpop.f32.mrb[0].mxu0
        %592 = vmatprep.mubr.f32.mxu0 %v427
        %593 = vmatmul.mubr.f32.gmra.mrb[0].mxu0 %v334
        %v594 = vpop.f32.mrb[0].mxu0
        %v595 = vadd.f32 %v420, %v594
        %v596 = vpop.f32.mrb[0].mxu0
        %597 = vmatprep.mubr.f32.mxu0 %v430
        %598 = vmatmul.mubr.f32.gmra.mrb[0].mxu0 %v336
        %v599 = vpop.f32.mrb[0].mxu0
        %v600 = vadd.f32 %v420, %v599
        %v601 = vpop.f32.mrb[0].mxu0
        %602 = vmatprep.mubr.f32.mxu0 %v433
        %603 = vmatmul.mubr.f32.gmra.mrb[0].mxu0 %v338
        %v604 = vpop.f32.mrb[0].mxu0
        %v605 = vadd.f32 %v420, %v604
        %v606 = vpop.f32.mrb[0].mxu0
        %607 = vmatprep.mubr.f32.mxu0 %v436
        %608 = vmatmul.mubr.f32.gmra.mrb[0].mxu0 %v340
        %v609 = vpop.f32.mrb[0].mxu0
        %v610 = vadd.f32 %v420, %v609
        %v611 = vpop.f32.mrb[0].mxu0
        %612 = vmatprep.mubr.f32.mxu0 %v439
        %613 = vmatmul.mubr.f32.gmra.mrb[0].mxu0 %v342
        %v614 = vpop.f32.mrb[0].mxu0
        %v615 = vadd.f32 %v420, %v614
        %v616 = vpop.f32.mrb[0].mxu0
        %617 = vmatprep.mubr.f32.mxu0 %v442
        %618 = vmatmul.mubr.f32.gmra.mrb[0].mxu0 %v344
        %v619 = vpop.f32.mrb[0].mxu0
        %v620 = vadd.f32 %v420, %v619
        %v621 = vpop.f32.mrb[0].mxu0
        %622 = vmatprep.mubr.f32.mxu0 %v445
        %623 = vmatmul.mubr.f32.gmra.mrb[0].mxu0 %v346
        %v624 = vpop.f32.mrb[0].mxu0
        %v625 = vadd.f32 %v420, %v624
        %v626 = vpop.f32.mrb[0].mxu0
        %627 = vmatprep.mubr.f32.mxu0 %v448
        %628 = vmatmul.mubr.f32.gmra.mrb[0].mxu0 %v348
        %v629 = vpop.f32.mrb[0].mxu0
        %v630 = vadd.f32 %v420, %v629
        %v631 = vpop.f32.mrb[0].mxu0
        %632 = vmatprep.mubr.f32.mxu0 %v451
        %633 = vmatmul.mubr.f32.gmra.mrb[0].mxu0 %v350
        %v634 = vpop.f32.mrb[0].mxu0
        %v635 = vadd.f32 %v420, %v634
        %v636 = vpop.f32.mrb[0].mxu0
        %637 = vmatprep.mubr.f32.mxu0 %v454
        %638 = vmatmul.mubr.f32.gmra.mrb[0].mxu0 %v352
        %v639 = vpop.f32.mrb[0].mxu0
        %v640 = vadd.f32 %v420, %v639
        %v641 = vpop.f32.mrb[0].mxu0
        %642 = vmatprep.mubr.f32.mxu0 %v457
        %643 = vmatmul.mubr.f32.gmra.mrb[0].mxu0 %v354
        %v644 = vpop.f32.mrb[0].mxu0
        %v645 = vadd.f32 %v420, %v644
        %v646 = vpop.f32.mrb[0].mxu0
        %647 = vmatprep.mubr.f32.mxu0 %v460
        %648 = vmatmul.mubr.f32.gmra.mrb[0].mxu0 %v356
        %v649 = vpop.f32.mrb[0].mxu0
        %v650 = vadd.f32 %v420, %v649
        %v651 = vpop.f32.mrb[0].mxu0
        %652 = vmatprep.mubr.f32.mxu0 %v463
        %653 = vmatmul.mubr.f32.gmra.mrb[0].mxu0 %v358
        %v654 = vpop.f32.mrb[0].mxu0
        %v655 = vadd.f32 %v420, %v654
        %v656 = vpop.f32.mrb[0].mxu0
        %657 = vmatprep.mubr.f32.mxu0 %v466
        %658 = vmatmul.mubr.f32.gmra.mrb[0].mxu0 %v360
        %v659 = vpop.f32.mrb[0].mxu0
        %v660 = vadd.f32 %v420, %v659
        %v661 = vpop.f32.mrb[0].mxu0
        %662 = vmatprep.mubr.f32.mxu0 %v469
        %663 = vmatmul.mubr.f32.gmra.mrb[0].mxu0 %v362
        %v664 = vpop.f32.mrb[0].mxu0
        %v665 = vadd.f32 %v420, %v664
        %v666 = vpop.f32.mrb[0].mxu0
        %667 = vmatprep.mubr.f32.mxu0 %v472
        %668 = vmatmul.mubr.f32.gmra.mrb[0].mxu0 %v364
        %v669 = vpop.f32.mrb[0].mxu0
        %v670 = vadd.f32 %v420, %v669
        %v671 = vpop.f32.mrb[0].mxu0
        %672 = vmatprep.mubr.f32.mxu0 %v475
        %673 = vmatmul.mubr.f32.gmra.mrb[0].mxu0 %v366
        %v674 = vpop.f32.mrb[0].mxu0
        %v675 = vadd.f32 %v420, %v674
        %v676 = vpop.f32.mrb[0].mxu0
        %677 = vmatprep.mubr.f32.mxu0 %v478
        %678 = vmatmul.mubr.f32.gmra.mrb[0].mxu0 %v368
        %v679 = vpop.f32.mrb[0].mxu0
        %v680 = vadd.f32 %v420, %v679
        %v681 = vpop.f32.mrb[0].mxu0
        %682 = vmatprep.mubr.f32.mxu0 %v481
        %683 = vmatmul.mubr.f32.gmra.mrb[0].mxu0 %v370
        %v684 = vpop.f32.mrb[0].mxu0
        %v685 = vadd.f32 %v420, %v684
        %v686 = vpop.f32.mrb[0].mxu0
        %687 = vmatprep.mubr.f32.mxu0 %v484
        %688 = vmatmul.mubr.f32.gmra.mrb[0].mxu0 %v372
        %v689 = vpop.f32.mrb[0].mxu0
        %v690 = vadd.f32 %v420, %v689
        %v691 = vpop.f32.mrb[0].mxu0
        %692 = vmatprep.mubr.f32.mxu0 %v487
        %693 = vmatmul.mubr.f32.gmra.mrb[0].mxu0 %v374
        %v694 = vpop.f32.mrb[0].mxu0
        %v695 = vadd.f32 %v420, %v694
        %v696 = vpop.f32.mrb[0].mxu0
        %697 = vmatprep.mubr.f32.mxu0 %v490
        %698 = vmatmul.mubr.f32.gmra.mrb[0].mxu0 %v376
        %v699 = vpop.f32.mrb[0].mxu0
        %v700 = vadd.f32 %v420, %v699
        %v701 = vpop.f32.mrb[0].mxu0
        %702 = vmatprep.mubr.f32.mxu0 %v493
        %703 = vmatmul.mubr.f32.gmra.mrb[0].mxu0 %v378
        %v704 = vpop.f32.mrb[0].mxu0
        %v705 = vadd.f32 %v420, %v704
        %v706 = vpop.f32.mrb[0].mxu0
        %707 = vmatprep.mubr.f32.mxu0 %v496
        %708 = vmatmul.mubr.f32.gmra.mrb[0].mxu0 %v380
        %v709 = vpop.f32.mrb[0].mxu0
        %v710 = vadd.f32 %v420, %v709
        %v711 = vpop.f32.mrb[0].mxu0
        %712 = vmatprep.mubr.f32.mxu0 %v499
        %713 = vmatmul.mubr.f32.gmra.mrb[0].mxu0 %v382
        %v714 = vpop.f32.mrb[0].mxu0
        %v715 = vadd.f32 %v420, %v714
        %v716 = vpop.f32.mrb[0].mxu0
        %717 = vmatprep.mubr.f32.mxu0 %v502
        %718 = vmatmul.mubr.f32.gmra.mrb[0].mxu0 %v384
        %v719 = vpop.f32.mrb[0].mxu0
        %v720 = vadd.f32 %v420, %v719
        %v721 = vpop.f32.mrb[0].mxu0
        %722 = vmatprep.mubr.f32.mxu0 %v505
        %723 = vmatmul.mubr.f32.gmra.mrb[0].mxu0 %v386
        %v724 = vpop.f32.mrb[0].mxu0
        %v725 = vadd.f32 %v420, %v724
        %v726 = vpop.f32.mrb[0].mxu0
        %727 = vmatprep.mubr.f32.mxu0 %v508
        %728 = vmatmul.mubr.f32.gmra.mrb[0].mxu0 %v388
        %v729 = vpop.f32.mrb[0].mxu0
        %v730 = vadd.f32 %v420, %v729
        %v731 = vpop.f32.mrb[0].mxu0
        %732 = vmatprep.mubr.f32.mxu0 %v511
        %733 = vmatmul.mubr.f32.gmra.mrb[0].mxu0 %v390
        %v734 = vpop.f32.mrb[0].mxu0
        %v735 = vadd.f32 %v420, %v734
        %v736 = vpop.f32.mrb[0].mxu0
        %737 = vmatprep.mubr.f32.mxu0 %v514
        %738 = vmatmul.mubr.f32.gmra.mrb[0].mxu0 %v392
        %v739 = vpop.f32.mrb[0].mxu0
        %v740 = vadd.f32 %v420, %v739
        %v741 = vpop.f32.mrb[0].mxu0
        %742 = vmatprep.mubr.f32.mxu0 %v517
        %743 = vmatmul.mubr.f32.gmra.mrb[0].mxu0 %v394
        %v744 = vpop.f32.mrb[0].mxu0
        %v745 = vadd.f32 %v420, %v744
        %v746 = vpop.f32.mrb[0].mxu0
        %747 = vdwg.mxu0
        %vm748 = vcmask 523264
        %749 = vst.msk [vmem:[%s305] sm:$0xff] %vm748, %v590
        %750 = vst.msk [vmem:[%s305 + $0x8] sm:$0xff] %vm748, %v595
        %751 = vst.msk [vmem:[%s305 + $0x10] sm:$0xff] %vm748, %v600
        %752 = vst.msk [vmem:[%s305 + $0x18] sm:$0xff] %vm748, %v605
        %753 = vst.msk [vmem:[%s305 + $0x20] sm:$0xff] %vm748, %v610
        %754 = vst.msk [vmem:[%s305 + $0x28] sm:$0xff] %vm748, %v615
        %755 = vst.msk [vmem:[%s305 + $0x30] sm:$0xff] %vm748, %v620
        %756 = vst.msk [vmem:[%s305 + $0x38] sm:$0xff] %vm748, %v625
        %757 = vst.msk [vmem:[%s305 + $0x40] sm:$0xff] %vm748, %v630
        %758 = vst.msk [vmem:[%s305 + $0x48] sm:$0xff] %vm748, %v635
        %759 = vst.msk [vmem:[%s305 + $0x50] sm:$0xff] %vm748, %v640
        %760 = vst.msk [vmem:[%s305 + $0x58] sm:$0xff] %vm748, %v645
        %761 = vst.msk [vmem:[%s305 + $0x60] sm:$0xff] %vm748, %v650
        %762 = vst.msk [vmem:[%s305 + $0x68] sm:$0xff] %vm748, %v655
        %763 = vst.msk [vmem:[%s305 + $0x70] sm:$0xff] %vm748, %v660
        %764 = vst.msk [vmem:[%s305 + $0x78] sm:$0xff] %vm748, %v665
        %765 = vst.msk [vmem:[%s305 + $0x80] sm:$0xff] %vm748, %v670
        %766 = vst.msk [vmem:[%s305 + $0x88] sm:$0xff] %vm748, %v675
        %767 = vst.msk [vmem:[%s305 + $0x90] sm:$0xff] %vm748, %v680
        %768 = vst.msk [vmem:[%s305 + $0x98] sm:$0xff] %vm748, %v685
        %769 = vst.msk [vmem:[%s305 + $0xa0] sm:$0xff] %vm748, %v690
        %770 = vst.msk [vmem:[%s305 + $0xa8] sm:$0xff] %vm748, %v695
        %771 = vst.msk [vmem:[%s305 + $0xb0] sm:$0xff] %vm748, %v700
        %772 = vst.msk [vmem:[%s305 + $0xb8] sm:$0xff] %vm748, %v705
        %773 = vst.msk [vmem:[%s305 + $0xc0] sm:$0xff] %vm748, %v710
        %774 = vst.msk [vmem:[%s305 + $0xc8] sm:$0xff] %vm748, %v715
        %775 = vst.msk [vmem:[%s305 + $0xd0] sm:$0xff] %vm748, %v720
        %776 = vst.msk [vmem:[%s305 + $0xd8] sm:$0xff] %vm748, %v725
        %777 = vst.msk [vmem:[%s305 + $0xe0] sm:$0xff] %vm748, %v730
        %778 = vst.msk [vmem:[%s305 + $0xe8] sm:$0xff] %vm748, %v735
        %779 = vst.msk [vmem:[%s305 + $0xf0] sm:$0xff] %vm748, %v740
        %780 = vst.msk [vmem:[%s305 + $0xf8] sm:$0xff] %vm748, %v745
        %v781 = vmax.f32 %v590, 0.0
        %v782 = vmax.f32 %v595, 0.0
        %v783 = vmax.f32 %v600, 0.0
        %v784 = vmax.f32 %v605, 0.0
        %v785 = vmax.f32 %v610, 0.0
        %v786 = vmax.f32 %v615, 0.0
        %v787 = vmax.f32 %v620, 0.0
        %v788 = vmax.f32 %v625, 0.0
        %v789 = vmax.f32 %v630, 0.0
        %v790 = vmax.f32 %v635, 0.0
        %v791 = vmax.f32 %v640, 0.0
        %v792 = vmax.f32 %v645, 0.0
        %v793 = vmax.f32 %v650, 0.0
        %v794 = vmax.f32 %v655, 0.0
        %v795 = vmax.f32 %v660, 0.0
        %v796 = vmax.f32 %v665, 0.0
        %v797 = vmax.f32 %v670, 0.0
        %v798 = vmax.f32 %v675, 0.0
        %v799 = vmax.f32 %v680, 0.0
        %v800 = vmax.f32 %v685, 0.0
        %v801 = vmax.f32 %v690, 0.0
        %v802 = vmax.f32 %v695, 0.0
        %v803 = vmax.f32 %v700, 0.0
        %v804 = vmax.f32 %v705, 0.0
        %v805 = vmax.f32 %v710, 0.0
        %v806 = vmax.f32 %v715, 0.0
        %v807 = vmax.f32 %v720, 0.0
        %v808 = vmax.f32 %v725, 0.0
        %v809 = vmax.f32 %v730, 0.0
        %v810 = vmax.f32 %v735, 0.0
        %v811 = vmax.f32 %v740, 0.0
        %v812 = vmax.f32 %v745, 0.0
        %vm845 = vcmask 1040384
        %v846 = vrot.slane %v781, 7
        %v847 = vrot.slane %v782, 7
        %v848 = vsel %vm845, %v846, %v847
        %v849 = vrot.slane %v783, 7
        %v850 = vrot.slane %v784, 7
        %v851 = vsel %vm845, %v849, %v850
        %v852 = vrot.slane %v785, 7
        %v853 = vrot.slane %v786, 7
        %v854 = vsel %vm845, %v852, %v853
        %v855 = vrot.slane %v787, 7
        %v856 = vrot.slane %v788, 7
        %v857 = vsel %vm845, %v855, %v856
        %v858 = vrot.slane %v789, 7
        %v859 = vrot.slane %v790, 7
        %v860 = vsel %vm845, %v858, %v859
        %v861 = vrot.slane %v791, 7
        %v862 = vrot.slane %v792, 7
        %v863 = vsel %vm845, %v861, %v862
        %v864 = vrot.slane %v793, 7
        %v865 = vrot.slane %v794, 7
        %v866 = vsel %vm845, %v864, %v865
        %v867 = vrot.slane %v795, 7
        %v868 = vrot.slane %v796, 7
        %v869 = vsel %vm845, %v867, %v868
        %v870 = vrot.slane %v797, 7
        %v871 = vrot.slane %v798, 7
        %v872 = vsel %vm845, %v870, %v871
        %v873 = vrot.slane %v799, 7
        %v874 = vrot.slane %v800, 7
        %v875 = vsel %vm845, %v873, %v874
        %v876 = vrot.slane %v801, 7
        %v877 = vrot.slane %v802, 7
        %v878 = vsel %vm845, %v876, %v877
        %v879 = vrot.slane %v803, 7
        %v880 = vrot.slane %v804, 7
        %v881 = vsel %vm845, %v879, %v880
        %v882 = vrot.slane %v805, 7
        %v883 = vrot.slane %v806, 7
        %v884 = vsel %vm845, %v882, %v883
        %v885 = vrot.slane %v807, 7
        %v886 = vrot.slane %v808, 7
        %v887 = vsel %vm845, %v885, %v886
        %v888 = vrot.slane %v809, 7
        %v889 = vrot.slane %v810, 7
        %v890 = vsel %vm845, %v888, %v889
        %v891 = vrot.slane %v811, 7
        %v892 = vrot.slane %v812, 7
        %v893 = vsel %vm845, %v891, %v892
        %v942 = vsel %vm845, 0.0, %v846
        %v943 = vsel %vm845, 0.0, %v849
        %v944 = vsel %vm845, 0.0, %v852
        %v945 = vsel %vm845, 0.0, %v855
        %v946 = vsel %vm845, 0.0, %v858
        %v947 = vsel %vm845, 0.0, %v861
        %v948 = vsel %vm845, 0.0, %v864
        %v949 = vsel %vm845, 0.0, %v867
        %v950 = vsel %vm845, 0.0, %v870
        %v951 = vsel %vm845, 0.0, %v873
        %v952 = vsel %vm845, 0.0, %v876
        %v953 = vsel %vm845, 0.0, %v879
        %v954 = vsel %vm845, 0.0, %v882
        %v955 = vsel %vm845, 0.0, %v885
        %v956 = vsel %vm845, 0.0, %v888
        %v957 = vsel %vm845, 0.0, %v891
        %v958 = vsel %vm845, %v847, 0.0
        %v959 = vsel %vm845, %v850, 0.0
        %v960 = vsel %vm845, %v853, 0.0
        %v961 = vsel %vm845, %v856, 0.0
        %v962 = vsel %vm845, %v859, 0.0
        %v963 = vsel %vm845, %v862, 0.0
        %v964 = vsel %vm845, %v865, 0.0
        %v965 = vsel %vm845, %v868, 0.0
        %v966 = vsel %vm845, %v871, 0.0
        %v967 = vsel %vm845, %v874, 0.0
        %v968 = vsel %vm845, %v877, 0.0
        %v969 = vsel %vm845, %v880, 0.0
        %v970 = vsel %vm845, %v883, 0.0
        %v971 = vsel %vm845, %v886, 0.0
        %v972 = vsel %vm845, %v889, 0.0
        %v973 = vsel %vm845, %v892, 0.0
        %vm989 = vcmask 1046528
        %v990 = vrot.slane 0.0, 1
        %v991 = vsel %vm989, %v990, %v990
        %v992 = vrot.slane %v943, 1
        %v993 = vrot.slane %v851, 1
        %v994 = vsel %vm989, %v992, %v993
        %v995 = vrot.slane %v959, 1
        %v996 = vsel %vm989, %v993, %v995
        %v997 = vrot.slane %v945, 1
        %v998 = vrot.slane %v857, 1
        %v999 = vsel %vm989, %v997, %v998
        %v1000 = vrot.slane %v961, 1
        %v1001 = vsel %vm989, %v998, %v1000
        %v1002 = vrot.slane %v947, 1
        %v1003 = vrot.slane %v863, 1
        %v1004 = vsel %vm989, %v1002, %v1003
        %v1005 = vrot.slane %v963, 1
        %v1006 = vsel %vm989, %v1003, %v1005
        %v1007 = vrot.slane %v949, 1
        %v1008 = vrot.slane %v869, 1
        %v1009 = vsel %vm989, %v1007, %v1008
        %v1010 = vrot.slane %v965, 1
        %v1011 = vsel %vm989, %v1008, %v1010
        %v1012 = vrot.slane %v951, 1
        %v1013 = vrot.slane %v875, 1
        %v1014 = vsel %vm989, %v1012, %v1013
        %v1015 = vrot.slane %v967, 1
        %v1016 = vsel %vm989, %v1013, %v1015
        %v1017 = vrot.slane %v953, 1
        %v1018 = vrot.slane %v881, 1
        %v1019 = vsel %vm989, %v1017, %v1018
        %v1020 = vrot.slane %v969, 1
        %v1021 = vsel %vm989, %v1018, %v1020
        %v1022 = vrot.slane %v955, 1
        %v1023 = vrot.slane %v887, 1
        %v1024 = vsel %vm989, %v1022, %v1023
        %v1025 = vrot.slane %v971, 1
        %v1026 = vsel %vm989, %v1023, %v1025
        %v1042 = vmax.f32 %v991, 0.0
        %v1043 = vmax.f32 %v943, %v994
        %v1044 = vmax.f32 %v851, %v996
        %v1045 = vmax.f32 %v945, %v999
        %v1046 = vmax.f32 %v857, %v1001
        %v1047 = vmax.f32 %v947, %v1004
        %v1048 = vmax.f32 %v863, %v1006
        %v1049 = vmax.f32 %v949, %v1009
        %v1050 = vmax.f32 %v869, %v1011
        %v1051 = vmax.f32 %v951, %v1014
        %v1052 = vmax.f32 %v875, %v1016
        %v1053 = vmax.f32 %v953, %v1019
        %v1054 = vmax.f32 %v881, %v1021
        %v1055 = vmax.f32 %v955, %v1024
        %v1056 = vmax.f32 %v887, %v1026
        %vm1057 = vcmask 1045504
        %v1058 = vrot.slane 0.0, 2
        %v1059 = vsel %vm1057, %v1058, %v1058
        %v1060 = vrot.slane %v943, 2
        %v1061 = vrot.slane %v851, 2
        %v1062 = vsel %vm1057, %v1060, %v1061
        %v1063 = vrot.slane %v959, 2
        %v1064 = vsel %vm1057, %v1061, %v1063
        %v1065 = vrot.slane %v945, 2
        %v1066 = vrot.slane %v857, 2
        %v1067 = vsel %vm1057, %v1065, %v1066
        %v1068 = vrot.slane %v961, 2
        %v1069 = vsel %vm1057, %v1066, %v1068
        %v1070 = vrot.slane %v947, 2
        %v1071 = vrot.slane %v863, 2
        %v1072 = vsel %vm1057, %v1070, %v1071
        %v1073 = vrot.slane %v963, 2
        %v1074 = vsel %vm1057, %v1071, %v1073
        %v1075 = vrot.slane %v949, 2
        %v1076 = vrot.slane %v869, 2
        %v1077 = vsel %vm1057, %v1075, %v1076
        %v1078 = vrot.slane %v965, 2
        %v1079 = vsel %vm1057, %v1076, %v1078
        %v1080 = vrot.slane %v951, 2
        %v1081 = vrot.slane %v875, 2
        %v1082 = vsel %vm1057, %v1080, %v1081
        %v1083 = vrot.slane %v967, 2
        %v1084 = vsel %vm1057, %v1081, %v1083
        %v1085 = vrot.slane %v953, 2
        %v1086 = vrot.slane %v881, 2
        %v1087 = vsel %vm1057, %v1085, %v1086
        %v1088 = vrot.slane %v969, 2
        %v1089 = vsel %vm1057, %v1086, %v1088
        %v1090 = vrot.slane %v955, 2
        %v1091 = vrot.slane %v887, 2
        %v1092 = vsel %vm1057, %v1090, %v1091
        %v1093 = vrot.slane %v971, 2
        %v1094 = vsel %vm1057, %v1091, %v1093
        %v1110 = vmax.f32 %v1042, %v1059
        %v1111 = vmax.f32 %v1043, %v1062
        %v1112 = vmax.f32 %v1044, %v1064
        %v1113 = vmax.f32 %v1045, %v1067
        %v1114 = vmax.f32 %v1046, %v1069
        %v1115 = vmax.f32 %v1047, %v1072
        %v1116 = vmax.f32 %v1048, %v1074
        %v1117 = vmax.f32 %v1049, %v1077
        %v1118 = vmax.f32 %v1050, %v1079
        %v1119 = vmax.f32 %v1051, %v1082
        %v1120 = vmax.f32 %v1052, %v1084
        %v1121 = vmax.f32 %v1053, %v1087
        %v1122 = vmax.f32 %v1054, %v1089
        %v1123 = vmax.f32 %v1055, %v1092
        %v1124 = vmax.f32 %v1056, %v1094
        %v1125 = vmax.f32 %v1110, %v942
        %v1126 = vmax.f32 %v1110, %v848
        %v1127 = vmax.f32 %v1111, %v944
        %v1128 = vmax.f32 %v1112, %v854
        %v1129 = vmax.f32 %v1113, %v946
        %v1130 = vmax.f32 %v1114, %v860
        %v1131 = vmax.f32 %v1115, %v948
        %v1132 = vmax.f32 %v1116, %v866
        %v1133 = vmax.f32 %v1117, %v950
        %v1134 = vmax.f32 %v1118, %v872
        %v1135 = vmax.f32 %v1119, %v952
        %v1136 = vmax.f32 %v1120, %v878
        %v1137 = vmax.f32 %v1121, %v954
        %v1138 = vmax.f32 %v1122, %v884
        %v1139 = vmax.f32 %v1123, %v956
        %v1140 = vmax.f32 %v1124, %v890
        %v1157 = vrot.slane %v942, 1
        %v1158 = vrot.slane %v848, 1
        %v1159 = vsel %vm989, %v1157, %v1158
        %v1160 = vrot.slane %v958, 1
        %v1161 = vsel %vm989, %v1158, %v1160
        %v1162 = vrot.slane %v944, 1
        %v1163 = vrot.slane %v854, 1
        %v1164 = vsel %vm989, %v1162, %v1163
        %v1165 = vrot.slane %v960, 1
        %v1166 = vsel %vm989, %v1163, %v1165
        %v1167 = vrot.slane %v946, 1
        %v1168 = vrot.slane %v860, 1
        %v1169 = vsel %vm989, %v1167, %v1168
        %v1170 = vrot.slane %v962, 1
        %v1171 = vsel %vm989, %v1168, %v1170
        %v1172 = vrot.slane %v948, 1
        %v1173 = vrot.slane %v866, 1
        %v1174 = vsel %vm989, %v1172, %v1173
        %v1175 = vrot.slane %v964, 1
        %v1176 = vsel %vm989, %v1173, %v1175
        %v1177 = vrot.slane %v950, 1
        %v1178 = vrot.slane %v872, 1
        %v1179 = vsel %vm989, %v1177, %v1178
        %v1180 = vrot.slane %v966, 1
        %v1181 = vsel %vm989, %v1178, %v1180
        %v1182 = vrot.slane %v952, 1
        %v1183 = vrot.slane %v878, 1
        %v1184 = vsel %vm989, %v1182, %v1183
        %v1185 = vrot.slane %v968, 1
        %v1186 = vsel %vm989, %v1183, %v1185
        %v1187 = vrot.slane %v954, 1
        %v1188 = vrot.slane %v884, 1
        %v1189 = vsel %vm989, %v1187, %v1188
        %v1190 = vrot.slane %v970, 1
        %v1191 = vsel %vm989, %v1188, %v1190
        %v1192 = vrot.slane %v956, 1
        %v1193 = vrot.slane %v890, 1
        %v1194 = vsel %vm989, %v1192, %v1193
        %v1195 = vrot.slane %v972, 1
        %v1196 = vsel %vm989, %v1193, %v1195
        %v1213 = vmax.f32 %v1125, %v1159
        %v1214 = vmax.f32 %v1126, %v1161
        %v1215 = vmax.f32 %v1127, %v1164
        %v1216 = vmax.f32 %v1128, %v1166
        %v1217 = vmax.f32 %v1129, %v1169
        %v1218 = vmax.f32 %v1130, %v1171
        %v1219 = vmax.f32 %v1131, %v1174
        %v1220 = vmax.f32 %v1132, %v1176
        %v1221 = vmax.f32 %v1133, %v1179
        %v1222 = vmax.f32 %v1134, %v1181
        %v1223 = vmax.f32 %v1135, %v1184
        %v1224 = vmax.f32 %v1136, %v1186
        %v1225 = vmax.f32 %v1137, %v1189
        %v1226 = vmax.f32 %v1138, %v1191
        %v1227 = vmax.f32 %v1139, %v1194
        %v1228 = vmax.f32 %v1140, %v1196
        %v1229 = vrot.slane %v942, 2
        %v1230 = vrot.slane %v848, 2
        %v1231 = vsel %vm1057, %v1229, %v1230
        %v1232 = vrot.slane %v958, 2
        %v1233 = vsel %vm1057, %v1230, %v1232
        %v1234 = vrot.slane %v944, 2
        %v1235 = vrot.slane %v854, 2
        %v1236 = vsel %vm1057, %v1234, %v1235
        %v1237 = vrot.slane %v960, 2
        %v1238 = vsel %vm1057, %v1235, %v1237
        %v1239 = vrot.slane %v946, 2
        %v1240 = vrot.slane %v860, 2
        %v1241 = vsel %vm1057, %v1239, %v1240
        %v1242 = vrot.slane %v962, 2
        %v1243 = vsel %vm1057, %v1240, %v1242
        %v1244 = vrot.slane %v948, 2
        %v1245 = vrot.slane %v866, 2
        %v1246 = vsel %vm1057, %v1244, %v1245
        %v1247 = vrot.slane %v964, 2
        %v1248 = vsel %vm1057, %v1245, %v1247
        %v1249 = vrot.slane %v950, 2
        %v1250 = vrot.slane %v872, 2
        %v1251 = vsel %vm1057, %v1249, %v1250
        %v1252 = vrot.slane %v966, 2
        %v1253 = vsel %vm1057, %v1250, %v1252
        %v1254 = vrot.slane %v952, 2
        %v1255 = vrot.slane %v878, 2
        %v1256 = vsel %vm1057, %v1254, %v1255
        %v1257 = vrot.slane %v968, 2
        %v1258 = vsel %vm1057, %v1255, %v1257
        %v1259 = vrot.slane %v954, 2
        %v1260 = vrot.slane %v884, 2
        %v1261 = vsel %vm1057, %v1259, %v1260
        %v1262 = vrot.slane %v970, 2
        %v1263 = vsel %vm1057, %v1260, %v1262
        %v1264 = vrot.slane %v956, 2
        %v1265 = vrot.slane %v890, 2
        %v1266 = vsel %vm1057, %v1264, %v1265
        %v1267 = vrot.slane %v972, 2
        %v1268 = vsel %vm1057, %v1265, %v1267
        %v1285 = vmax.f32 %v1213, %v1231
        %v1286 = vmax.f32 %v1214, %v1233
        %v1287 = vmax.f32 %v1215, %v1236
        %v1288 = vmax.f32 %v1216, %v1238
        %v1289 = vmax.f32 %v1217, %v1241
        %v1290 = vmax.f32 %v1218, %v1243
        %v1291 = vmax.f32 %v1219, %v1246
        %v1292 = vmax.f32 %v1220, %v1248
        %v1293 = vmax.f32 %v1221, %v1251
        %v1294 = vmax.f32 %v1222, %v1253
        %v1295 = vmax.f32 %v1223, %v1256
        %v1296 = vmax.f32 %v1224, %v1258
        %v1297 = vmax.f32 %v1225, %v1261
        %v1298 = vmax.f32 %v1226, %v1263
        %v1299 = vmax.f32 %v1227, %v1266
        %v1300 = vmax.f32 %v1228, %v1268
        %v1301 = vmax.f32 %v1285, %v943
        %v1302 = vmax.f32 %v1286, %v851
        %v1303 = vmax.f32 %v1287, %v945
        %v1304 = vmax.f32 %v1288, %v857
        %v1305 = vmax.f32 %v1289, %v947
        %v1306 = vmax.f32 %v1290, %v863
        %v1307 = vmax.f32 %v1291, %v949
        %v1308 = vmax.f32 %v1292, %v869
        %v1309 = vmax.f32 %v1293, %v951
        %v1310 = vmax.f32 %v1294, %v875
        %v1311 = vmax.f32 %v1295, %v953
        %v1312 = vmax.f32 %v1296, %v881
        %v1313 = vmax.f32 %v1297, %v955
        %v1314 = vmax.f32 %v1298, %v887
        %v1315 = vmax.f32 %v1299, %v957
        %v1316 = vmax.f32 %v1300, %v893
        %v1319 = vrot.slane %v957, 1
        %v1320 = vrot.slane %v893, 1
        %v1321 = vsel %vm989, %v1319, %v1320
        %v1322 = vrot.slane %v973, 1
        %v1323 = vsel %vm989, %v1320, %v1322
        %v1326 = vmax.f32 %v1301, %v994
        %v1327 = vmax.f32 %v1302, %v996
        %v1328 = vmax.f32 %v1303, %v999
        %v1329 = vmax.f32 %v1304, %v1001
        %v1330 = vmax.f32 %v1305, %v1004
        %v1331 = vmax.f32 %v1306, %v1006
        %v1332 = vmax.f32 %v1307, %v1009
        %v1333 = vmax.f32 %v1308, %v1011
        %v1334 = vmax.f32 %v1309, %v1014
        %v1335 = vmax.f32 %v1310, %v1016
        %v1336 = vmax.f32 %v1311, %v1019
        %v1337 = vmax.f32 %v1312, %v1021
        %v1338 = vmax.f32 %v1313, %v1024
        %v1339 = vmax.f32 %v1314, %v1026
        %v1340 = vmax.f32 %v1315, %v1321
        %v1341 = vmax.f32 %v1316, %v1323
        %v1342 = vrot.slane %v957, 2
        %v1343 = vrot.slane %v893, 2
        %v1344 = vsel %vm1057, %v1342, %v1343
        %v1345 = vrot.slane %v973, 2
        %v1346 = vsel %vm1057, %v1343, %v1345
        %v1349 = vmax.f32 %v1326, %v1062
        %v1350 = vmax.f32 %v1327, %v1064
        %v1351 = vmax.f32 %v1328, %v1067
        %v1352 = vmax.f32 %v1329, %v1069
        %v1353 = vmax.f32 %v1330, %v1072
        %v1354 = vmax.f32 %v1331, %v1074
        %v1355 = vmax.f32 %v1332, %v1077
        %v1356 = vmax.f32 %v1333, %v1079
        %v1357 = vmax.f32 %v1334, %v1082
        %v1358 = vmax.f32 %v1335, %v1084
        %v1359 = vmax.f32 %v1336, %v1087
        %v1360 = vmax.f32 %v1337, %v1089
        %v1361 = vmax.f32 %v1338, %v1092
        %v1362 = vmax.f32 %v1339, %v1094
        %v1363 = vmax.f32 %v1340, %v1344
        %v1364 = vmax.f32 %v1341, %v1346
        %v1373 = vrot.slane %v1349, 1
        %v1374 = vrot.slane %v1351, 1
        %v1375 = vrot.slane %v1353, 1
        %v1376 = vrot.slane %v1355, 1
        %v1377 = vrot.slane %v1357, 1
        %v1378 = vrot.slane %v1359, 1
        %v1379 = vrot.slane %v1361, 1
        %v1380 = vrot.slane %v1363, 1
        %v1389 = vrot.slane %v1349, 2
        %v1390 = vrot.slane %v1351, 2
        %v1391 = vrot.slane %v1353, 2
        %v1392 = vrot.slane %v1355, 2
        %v1393 = vrot.slane %v1357, 2
        %v1394 = vrot.slane %v1359, 2
        %v1395 = vrot.slane %v1361, 2
        %v1396 = vrot.slane %v1363, 2
        %v1405 = vrot.slane %v1349, 3
        %v1406 = vrot.slane %v1351, 3
        %v1407 = vrot.slane %v1353, 3
        %v1408 = vrot.slane %v1355, 3
        %v1409 = vrot.slane %v1357, 3
        %v1410 = vrot.slane %v1359, 3
        %v1411 = vrot.slane %v1361, 3
        %v1412 = vrot.slane %v1363, 3
        %v1429 = vrot.slane %v1350, 4
        %v1430 = vrot.slane %v1352, 4
        %v1431 = vrot.slane %v1354, 4
        %v1432 = vrot.slane %v1356, 4
        %v1433 = vrot.slane %v1358, 4
        %v1434 = vrot.slane %v1360, 4
        %v1435 = vrot.slane %v1362, 4
        %v1436 = vrot.slane %v1364, 4
        %v1445 = vrot.slane %v1350, 5
        %v1446 = vrot.slane %v1352, 5
        %v1447 = vrot.slane %v1354, 5
        %v1448 = vrot.slane %v1356, 5
        %v1449 = vrot.slane %v1358, 5
        %v1450 = vrot.slane %v1360, 5
        %v1451 = vrot.slane %v1362, 5
        %v1452 = vrot.slane %v1364, 5
        %v1461 = vrot.slane %v1350, 6
        %v1462 = vrot.slane %v1352, 6
        %v1463 = vrot.slane %v1354, 6
        %v1464 = vrot.slane %v1356, 6
        %v1465 = vrot.slane %v1358, 6
        %v1466 = vrot.slane %v1360, 6
        %v1467 = vrot.slane %v1362, 6
        %v1468 = vrot.slane %v1364, 6
        %v1477 = vrot.slane %v1350, 7
        %v1478 = vrot.slane %v1352, 7
        %v1479 = vrot.slane %v1354, 7
        %v1480 = vrot.slane %v1356, 7
        %v1481 = vrot.slane %v1358, 7
        %v1482 = vrot.slane %v1360, 7
        %v1483 = vrot.slane %v1362, 7
        %v1484 = vrot.slane %v1364, 7
        %v1493 = vsel %vm845, %v1349, %v1373
        %v1494 = vsel %vm845, %v1351, %v1374
        %v1495 = vsel %vm845, %v1353, %v1375
        %v1496 = vsel %vm845, %v1355, %v1376
        %v1497 = vsel %vm845, %v1357, %v1377
        %v1498 = vsel %vm845, %v1359, %v1378
        %v1499 = vsel %vm845, %v1361, %v1379
        %v1500 = vsel %vm845, %v1363, %v1380
        %vm1501 = vcmask 1041408
        %v1502 = vsel %vm1501, %v1493, %v1389
        %v1503 = vsel %vm1501, %v1494, %v1390
        %v1504 = vsel %vm1501, %v1495, %v1391
        %v1505 = vsel %vm1501, %v1496, %v1392
        %v1506 = vsel %vm1501, %v1497, %v1393
        %v1507 = vsel %vm1501, %v1498, %v1394
        %v1508 = vsel %vm1501, %v1499, %v1395
        %v1509 = vsel %vm1501, %v1500, %v1396
        %v1510 = vsel %vm519, %v1502, %v1405
        %v1511 = vsel %vm519, %v1503, %v1406
        %v1512 = vsel %vm519, %v1504, %v1407
        %v1513 = vsel %vm519, %v1505, %v1408
        %v1514 = vsel %vm519, %v1506, %v1409
        %v1515 = vsel %vm519, %v1507, %v1410
        %v1516 = vsel %vm519, %v1508, %v1411
        %v1517 = vsel %vm519, %v1509, %v1412
        %vm1518 = vcmask 1043456
        %v1519 = vsel %vm1518, %v1510, %v1429
        %v1520 = vsel %vm1518, %v1511, %v1430
        %v1521 = vsel %vm1518, %v1512, %v1431
        %v1522 = vsel %vm1518, %v1513, %v1432
        %v1523 = vsel %vm1518, %v1514, %v1433
        %v1524 = vsel %vm1518, %v1515, %v1434
        %v1525 = vsel %vm1518, %v1516, %v1435
        %v1526 = vsel %vm1518, %v1517, %v1436
        %vm1527 = vcmask 1044480
        %v1528 = vsel %vm1527, %v1519, %v1445
        %v1529 = vsel %vm1527, %v1520, %v1446
        %v1530 = vsel %vm1527, %v1521, %v1447
        %v1531 = vsel %vm1527, %v1522, %v1448
        %v1532 = vsel %vm1527, %v1523, %v1449
        %v1533 = vsel %vm1527, %v1524, %v1450
        %v1534 = vsel %vm1527, %v1525, %v1451
        %v1535 = vsel %vm1527, %v1526, %v1452
        %v1536 = vsel %vm1057, %v1528, %v1461
        %v1537 = vsel %vm1057, %v1529, %v1462
        %v1538 = vsel %vm1057, %v1530, %v1463
        %v1539 = vsel %vm1057, %v1531, %v1464
        %v1540 = vsel %vm1057, %v1532, %v1465
        %v1541 = vsel %vm1057, %v1533, %v1466
        %v1542 = vsel %vm1057, %v1534, %v1467
        %v1543 = vsel %vm1057, %v1535, %v1468
        %v1544 = vsel %vm989, %v1536, %v1477
        %v1545 = vsel %vm989, %v1537, %v1478
        %v1546 = vsel %vm989, %v1538, %v1479
        %v1547 = vsel %vm989, %v1539, %v1480
        %v1548 = vsel %vm989, %v1540, %v1481
        %v1549 = vsel %vm989, %v1541, %v1482
        %v1550 = vsel %vm989, %v1542, %v1483
        %v1551 = vsel %vm989, %v1543, %v1484
        %1552 = vst.msk [vmem:[%s312] sm:$0xff] %vm748, %v1544
        %1553 = vst.msk [vmem:[%s312 + $0x8] sm:$0xff] %vm748, %v1545
        %1554 = vst.msk [vmem:[%s312 + $0x10] sm:$0xff] %vm748, %v1546
        %1555 = vst.msk [vmem:[%s312 + $0x18] sm:$0xff] %vm748, %v1547
        %1556 = vst.msk [vmem:[%s312 + $0x20] sm:$0xff] %vm748, %v1548
        %1557 = vst.msk [vmem:[%s312 + $0x28] sm:$0xff] %vm748, %v1549
        %1558 = vst.msk [vmem:[%s312 + $0x30] sm:$0xff] %vm748, %v1550
        %1559 = vst.msk [vmem:[%s312 + $0x38] sm:$0xff] %vm748, %v1551
        %v1568 = vrot.slane %v1544, 7
        %v1569 = vrot.slane %v1545, 7
        %v1570 = vrot.slane %v1546, 7
        %v1571 = vrot.slane %v1547, 7
        %v1572 = vrot.slane %v1548, 7
        %v1573 = vrot.slane %v1549, 7
        %v1574 = vrot.slane %v1550, 7
        %v1575 = vrot.slane %v1551, 7
        %v1584 = vsel %vm845, 0.0, %v1568
        %v1585 = vsel %vm845, 0.0, %v1569
        %v1586 = vsel %vm845, 0.0, %v1570
        %v1587 = vsel %vm845, 0.0, %v1571
        %v1588 = vsel %vm845, 0.0, %v1572
        %v1589 = vsel %vm845, 0.0, %v1573
        %v1590 = vsel %vm845, 0.0, %v1574
        %v1591 = vsel %vm845, 0.0, %v1575
        %v1592 = vsel %vm845, %v1568, 0.0
        %v1593 = vsel %vm845, %v1569, 0.0
        %v1594 = vsel %vm845, %v1570, 0.0
        %v1595 = vsel %vm845, %v1571, 0.0
        %v1596 = vsel %vm845, %v1572, 0.0
        %v1597 = vsel %vm845, %v1573, 0.0
        %v1598 = vsel %vm845, %v1574, 0.0
        %v1599 = vsel %vm845, %v1575, 0.0
        %v1604 = vrot.slane %v1585, 1
        %v1605 = vrot.slane %v1587, 1
        %v1606 = vrot.slane %v1589, 1
        %v1607 = vrot.slane %v1591, 1
        %v1613 = vrot.slane %v1585, 2
        %v1614 = vrot.slane %v1587, 2
        %v1615 = vrot.slane %v1589, 2
        %v1616 = vrot.slane %v1591, 2
        %v1622 = vrot.slane 0.0, 3
        %v1623 = vrot.slane %v1585, 3
        %v1624 = vrot.slane %v1587, 3
        %v1625 = vrot.slane %v1589, 3
        %v1626 = vrot.slane %v1591, 3
        %v1636 = vrot.slane 0.0, 4
        %v1637 = vrot.slane %v1593, 4
        %v1638 = vrot.slane %v1595, 4
        %v1639 = vrot.slane %v1597, 4
        %v1640 = vrot.slane %v1599, 4
        %v1646 = vsel %vm845, 0.0, %v990
        %v1647 = vsel %vm845, %v1585, %v1604
        %v1648 = vsel %vm845, %v1587, %v1605
        %v1649 = vsel %vm845, %v1589, %v1606
        %v1650 = vsel %vm845, %v1591, %v1607
        %v1651 = vsel %vm1501, %v1646, %v1058
        %v1652 = vsel %vm1501, %v1647, %v1613
        %v1653 = vsel %vm1501, %v1648, %v1614
        %v1654 = vsel %vm1501, %v1649, %v1615
        %v1655 = vsel %vm1501, %v1650, %v1616
        %v1656 = vsel %vm519, %v1651, %v1622
        %v1657 = vsel %vm519, %v1652, %v1623
        %v1658 = vsel %vm519, %v1653, %v1624
        %v1659 = vsel %vm519, %v1654, %v1625
        %v1660 = vsel %vm519, %v1655, %v1626
        %v1661 = vsel %vm1518, %v1656, %v1636
        %v1662 = vsel %vm1518, %v1657, %v1637
        %v1663 = vsel %vm1518, %v1658, %v1638
        %v1664 = vsel %vm1518, %v1659, %v1639
        %v1665 = vsel %vm1518, %v1660, %v1640
        %v1666 = vrot.slane %v1585, 4
        %v1667 = vrot.slane %v1587, 4
        %v1668 = vrot.slane %v1589, 4
        %v1669 = vrot.slane %v1591, 4
        %v1674 = vrot.slane 0.0, 5
        %v1675 = vrot.slane %v1593, 5
        %v1676 = vrot.slane %v1595, 5
        %v1677 = vrot.slane %v1597, 5
        %v1678 = vrot.slane %v1599, 5
        %v1684 = vsel %vm845, %v990, %v1058
        %v1685 = vsel %vm845, %v1604, %v1613
        %v1686 = vsel %vm845, %v1605, %v1614
        %v1687 = vsel %vm845, %v1606, %v1615
        %v1688 = vsel %vm845, %v1607, %v1616
        %v1689 = vsel %vm1501, %v1684, %v1622
        %v1690 = vsel %vm1501, %v1685, %v1623
        %v1691 = vsel %vm1501, %v1686, %v1624
        %v1692 = vsel %vm1501, %v1687, %v1625
        %v1693 = vsel %vm1501, %v1688, %v1626
        %v1694 = vsel %vm519, %v1689, %v1636
        %v1695 = vsel %vm519, %v1690, %v1666
        %v1696 = vsel %vm519, %v1691, %v1667
        %v1697 = vsel %vm519, %v1692, %v1668
        %v1698 = vsel %vm519, %v1693, %v1669
        %v1699 = vsel %vm1518, %v1694, %v1674
        %v1700 = vsel %vm1518, %v1695, %v1675
        %v1701 = vsel %vm1518, %v1696, %v1676
        %v1702 = vsel %vm1518, %v1697, %v1677
        %v1703 = vsel %vm1518, %v1698, %v1678
        %v1708 = vrot.slane %v1584, 1
        %v1709 = vrot.slane %v1586, 1
        %v1710 = vrot.slane %v1588, 1
        %v1711 = vrot.slane %v1590, 1
        %v1716 = vrot.slane %v1584, 2
        %v1717 = vrot.slane %v1586, 2
        %v1718 = vrot.slane %v1588, 2
        %v1719 = vrot.slane %v1590, 2
        %v1724 = vrot.slane %v1584, 3
        %v1725 = vrot.slane %v1586, 3
        %v1726 = vrot.slane %v1588, 3
        %v1727 = vrot.slane %v1590, 3
        %v1736 = vrot.slane %v1592, 4
        %v1737 = vrot.slane %v1594, 4
        %v1738 = vrot.slane %v1596, 4
        %v1739 = vrot.slane %v1598, 4
        %v1744 = vsel %vm845, %v1584, %v1708
        %v1745 = vsel %vm845, %v1586, %v1709
        %v1746 = vsel %vm845, %v1588, %v1710
        %v1747 = vsel %vm845, %v1590, %v1711
        %v1748 = vsel %vm1501, %v1744, %v1716
        %v1749 = vsel %vm1501, %v1745, %v1717
        %v1750 = vsel %vm1501, %v1746, %v1718
        %v1751 = vsel %vm1501, %v1747, %v1719
        %v1752 = vsel %vm519, %v1748, %v1724
        %v1753 = vsel %vm519, %v1749, %v1725
        %v1754 = vsel %vm519, %v1750, %v1726
        %v1755 = vsel %vm519, %v1751, %v1727
        %v1756 = vsel %vm1518, %v1752, %v1736
        %v1757 = vsel %vm1518, %v1753, %v1737
        %v1758 = vsel %vm1518, %v1754, %v1738
        %v1759 = vsel %vm1518, %v1755, %v1739
        %v1760 = vrot.slane %v1584, 4
        %v1761 = vrot.slane %v1586, 4
        %v1762 = vrot.slane %v1588, 4
        %v1763 = vrot.slane %v1590, 4
        %v1768 = vrot.slane %v1592, 5
        %v1769 = vrot.slane %v1594, 5
        %v1770 = vrot.slane %v1596, 5
        %v1771 = vrot.slane %v1598, 5
        %v1776 = vsel %vm845, %v1708, %v1716
        %v1777 = vsel %vm845, %v1709, %v1717
        %v1778 = vsel %vm845, %v1710, %v1718
        %v1779 = vsel %vm845, %v1711, %v1719
        %v1780 = vsel %vm1501, %v1776, %v1724
        %v1781 = vsel %vm1501, %v1777, %v1725
        %v1782 = vsel %vm1501, %v1778, %v1726
        %v1783 = vsel %vm1501, %v1779, %v1727
        %v1784 = vsel %vm519, %v1780, %v1760
        %v1785 = vsel %vm519, %v1781, %v1761
        %v1786 = vsel %vm519, %v1782, %v1762
        %v1787 = vsel %vm519, %v1783, %v1763
        %v1788 = vsel %vm1518, %v1784, %v1768
        %v1789 = vsel %vm1518, %v1785, %v1769
        %v1790 = vsel %vm1518, %v1786, %v1770
        %v1791 = vsel %vm1518, %v1787, %v1771
        %v1796 = vcombine.high %v1661, %v1661
        %v1797 = vcombine.high %v1662, %v1662
        %v1798 = vcombine.high %v1663, %v1663
        %v1799 = vcombine.high %v1664, %v1664
        %vm1800 = vcmask 1046532
        %vm1801 = vmor %vm519, %vm1800
        %v1802 = vrot.slane %v1661, 5
        %v1803 = vrot.slane %v1802, 4
        %v1804 = vrot.slane %v1796, 5
        %v1805 = vsel %vm1801, %v1803, %v1804
        %v1806 = vrot.slane %v1662, 5
        %v1807 = vrot.slane %v1806, 4
        %v1808 = vrot.slane %v1797, 5
        %v1809 = vsel %vm1801, %v1807, %v1808
        %v1810 = vrot.slane %v1663, 5
        %v1811 = vrot.slane %v1810, 4
        %v1812 = vrot.slane %v1798, 5
        %v1813 = vsel %vm1801, %v1811, %v1812
        %v1814 = vrot.slane %v1664, 5
        %v1815 = vrot.slane %v1814, 4
        %v1816 = vrot.slane %v1799, 5
        %v1817 = vsel %vm1801, %v1815, %v1816
        %v1822 = vcombine.high %v1756, %v1756
        %v1823 = vcombine.high %v1757, %v1757
        %v1824 = vcombine.high %v1758, %v1758
        %v1825 = vcombine.high %v1759, %v1759
        %v1826 = vrot.slane %v1756, 5
        %v1827 = vrot.slane %v1826, 4
        %v1828 = vrot.slane %v1822, 5
        %v1829 = vsel %vm1801, %v1827, %v1828
        %v1830 = vrot.slane %v1757, 5
        %v1831 = vrot.slane %v1830, 4
        %v1832 = vrot.slane %v1823, 5
        %v1833 = vsel %vm1801, %v1831, %v1832
        %v1834 = vrot.slane %v1758, 5
        %v1835 = vrot.slane %v1834, 4
        %v1836 = vrot.slane %v1824, 5
        %v1837 = vsel %vm1801, %v1835, %v1836
        %v1838 = vrot.slane %v1759, 5
        %v1839 = vrot.slane %v1838, 4
        %v1840 = vrot.slane %v1825, 5
        %v1841 = vsel %vm1801, %v1839, %v1840
        %v1843 = vcombine.high %v1665, %v1665
        %v1844 = vrot.slane %v1665, 5
        %v1845 = vrot.slane %v1844, 4
        %v1846 = vrot.slane %v1843, 5
        %v1847 = vsel %vm1801, %v1845, %v1846
        %v1848 = vcombine.low %v1661, %v1662
        %v1849 = vcombine.low %v1663, %v1664
        %v1856 = vcombine.low %v1699, %v1700
        %v1857 = vcombine.low %v1701, %v1702
        %1858 = vrot.lane.b32.xlu0 %v1856, 64
        %v1859 = vpop.permute.xlu0 %1858
        %1860 = vrot.lane.b32.xlu0 %v1857, 64
        %v1861 = vpop.permute.xlu0 %1860
        %v1864 = vcombine.low %v1805, %v1809
        %v1865 = vcombine.low %v1813, %v1817
        %v1868 = vcombine.low %v1756, %v1757
        %v1869 = vcombine.low %v1758, %v1759
        %1870 = vrot.lane.b32.xlu0 %v1868, 64
        %v1871 = vpop.permute.xlu0 %1870
        %1872 = vrot.lane.b32.xlu0 %v1869, 64
        %v1873 = vpop.permute.xlu0 %1872
        %v1880 = vcombine.low %v1788, %v1789
        %v1881 = vcombine.low %v1790, %v1791
        %v1884 = vcombine.low %v1829, %v1833
        %v1885 = vcombine.low %v1837, %v1841
        %1886 = vrot.lane.b32.xlu0 %v1884, 64
        %v1887 = vpop.permute.xlu0 %1886
        %1888 = vrot.lane.b32.xlu0 %v1885, 64
        %v1889 = vpop.permute.xlu0 %1888
        %v1892 = vcombine.low %v1662, %v1663
        %v1893 = vcombine.low %v1664, %v1665
        %v1897 = vcombine.low %v1700, %v1701
        %v1898 = vcombine.low %v1702, %v1703
        %1899 = vrot.lane.b32.xlu0 %v1897, 64
        %v1900 = vpop.permute.xlu0 %1899
        %1901 = vrot.lane.b32.xlu0 %v1898, 64
        %v1902 = vpop.permute.xlu0 %1901
        %v1905 = vcombine.low %v1809, %v1813
        %v1906 = vcombine.low %v1817, %v1847
        %v1907 = vsel %vm748, %v1848, %v1859
        %v1908 = vsel %vm748, %v1849, %v1861
        %v1909 = vsel %vm748, %v1864, %v1871
        %v1910 = vsel %vm748, %v1865, %v1873
        %v1911 = vsel %vm748, %v1880, %v1887
        %v1912 = vsel %vm748, %v1881, %v1889
        %v1913 = vsel %vm748, %v1892, %v1900
        %v1914 = vsel %vm748, %v1893, %v1902
        %v1915 = vld [vmem:[%s3] sm:$0xff]
        %v1916 = vld [vmem:[%s3 + $0x8] sm:$0xff]
        %v1917 = vld [vmem:[%s3 + $0x10] sm:$0xff]
        %v1918 = vld [vmem:[%s3 + $0x18] sm:$0xff]
        %v1919 = vld [vmem:[%s3 + $0x20] sm:$0xff]
        %v1920 = vld [vmem:[%s3 + $0x28] sm:$0xff]
        %v1921 = vld [vmem:[%s3 + $0x30] sm:$0xff]
        %v1922 = vld [vmem:[%s3 + $0x38] sm:$0xff]
        %v1923 = vld [vmem:[%s3 + $0x40] sm:$0xff]
        %v1924 = vld [vmem:[%s3 + $0x48] sm:$0xff]
        %v1925 = vld [vmem:[%s3 + $0x50] sm:$0xff]
        %v1926 = vld [vmem:[%s3 + $0x58] sm:$0xff]
        %v1927 = vld [vmem:[%s3 + $0x60] sm:$0xff]
        %v1928 = vld [vmem:[%s3 + $0x68] sm:$0xff]
        %v1929 = vld [vmem:[%s3 + $0x70] sm:$0xff]
        %v1930 = vld [vmem:[%s3 + $0x78] sm:$0xff]
        %v1931 = vld [vmem:[%s3 + $0x80] sm:$0xff]
        %v1932 = vld [vmem:[%s3 + $0x88] sm:$0xff]
        %v1933 = vld [vmem:[%s3 + $0x90] sm:$0xff]
        %v1934 = vld [vmem:[%s3 + $0x98] sm:$0xff]
        %v1935 = vld [vmem:[%s3 + $0xa0] sm:$0xff]
        %v1936 = vld [vmem:[%s3 + $0xa8] sm:$0xff]
        %v1937 = vld [vmem:[%s3 + $0xb0] sm:$0xff]
        %v1938 = vld [vmem:[%s3 + $0xb8] sm:$0xff]
        %v1939 = vld [vmem:[%s3 + $0xc0] sm:$0xff]
        %v1940 = vld [vmem:[%s3 + $0xc8] sm:$0xff]
        %v1941 = vld [vmem:[%s3 + $0xd0] sm:$0xff]
        %v1942 = vld [vmem:[%s3 + $0xd8] sm:$0xff]
        %v1943 = vld [vmem:[%s3 + $0xe0] sm:$0xff]
        %v1944 = vld [vmem:[%s3 + $0xe8] sm:$0xff]
        %v1945 = vld [vmem:[%s3 + $0xf0] sm:$0xff]
        %v1946 = vld [vmem:[%s3 + $0xf8] sm:$0xff]
        %v1947 = vld [vmem:[%s3 + $0x100] sm:$0xff]
        %v1948 = vld [vmem:[%s3 + $0x108] sm:$0xff]
        %v1949 = vld [vmem:[%s3 + $0x110] sm:$0xff]
        %v1950 = vld [vmem:[%s3 + $0x118] sm:$0xff]
        %v1951 = vld [vmem:[%s3 + $0x120] sm:$0xff]
        %v1952 = vld [vmem:[%s3 + $0x128] sm:$0xff]
        %v1953 = vld [vmem:[%s3 + $0x130] sm:$0xff]
        %v1954 = vld [vmem:[%s3 + $0x138] sm:$0xff]
        %v1955 = vld [vmem:[%s3 + $0x140] sm:$0xff]
        %v1956 = vld [vmem:[%s3 + $0x148] sm:$0xff]
        %v1957 = vld [vmem:[%s3 + $0x150] sm:$0xff]
        %v1958 = vld [vmem:[%s3 + $0x158] sm:$0xff]
        %v1959 = vld [vmem:[%s3 + $0x160] sm:$0xff]
        %v1960 = vld [vmem:[%s3 + $0x168] sm:$0xff]
        %v1961 = vld [vmem:[%s3 + $0x170] sm:$0xff]
        %v1962 = vld [vmem:[%s3 + $0x178] sm:$0xff]
        %v1963 = vld [vmem:[%s3 + $0x180] sm:$0xff]
        %v1964 = vld [vmem:[%s3 + $0x188] sm:$0xff]
        %v1965 = vld [vmem:[%s3 + $0x190] sm:$0xff]
        %v1966 = vld [vmem:[%s3 + $0x198] sm:$0xff]
        %v1967 = vld [vmem:[%s3 + $0x1a0] sm:$0xff]
        %v1968 = vld [vmem:[%s3 + $0x1a8] sm:$0xff]
        %v1969 = vld [vmem:[%s3 + $0x1b0] sm:$0xff]
        %v1970 = vld [vmem:[%s3 + $0x1b8] sm:$0xff]
        %v1971 = vld [vmem:[%s3 + $0x1c0] sm:$0xff]
        %v1972 = vld [vmem:[%s3 + $0x1c8] sm:$0xff]
        %v1973 = vld [vmem:[%s3 + $0x1d0] sm:$0xff]
        %v1974 = vld [vmem:[%s3 + $0x1d8] sm:$0xff]
        %v1975 = vld [vmem:[%s3 + $0x1e0] sm:$0xff]
        %v1976 = vld [vmem:[%s3 + $0x1e8] sm:$0xff]
        %v1977 = vld [vmem:[%s3 + $0x1f0] sm:$0xff]
        %v1978 = vld [vmem:[%s3 + $0x1f8] sm:$0xff]
        %v1979 = vld [vmem:[%s3 + $0x200] sm:$0xff]
        %v1980 = vld [vmem:[%s3 + $0x208] sm:$0xff]
        %v1981 = vld [vmem:[%s3 + $0x210] sm:$0xff]
        %v1982 = vld [vmem:[%s3 + $0x218] sm:$0xff]
        %v1983 = vld [vmem:[%s3 + $0x220] sm:$0xff]
        %v1984 = vld [vmem:[%s3 + $0x228] sm:$0xff]
        %v1985 = vld [vmem:[%s3 + $0x230] sm:$0xff]
        %v1986 = vld [vmem:[%s3 + $0x238] sm:$0xff]
        %v1987 = vld [vmem:[%s4] sm:$0x1]
        %v1989 = vlaneseq
        %v1990 = vshrl.u32 %v1989, 7
        %v1991 = vsub.s32 0, %v1990
        %v1992 = vrot.slane %v1987, %v1991
        %v1994 = vsel %vm748, %v1905, 0
        %v1996 = vsel %vm748, %v1906, 0
        %1998 = vmatprep.subr.mxu0 0.0
        %1999 = vmatpush1.msra.mxu0 %v1915
        %2000 = vmatprep.subr.mxu0 0.0
        %2001 = vmatpush1.msra.mxu0 %v1916
        %2002 = vmatprep.subr.mxu0 0.0
        %2003 = vmatpush1.msra.mxu0 %v1917
        %2004 = vmatprep.subr.mxu0 0.0
        %2005 = vmatpush1.msra.mxu0 %v1918
        %2006 = vmatprep.subr.mxu0 0.0
        %2007 = vmatpush1.msra.mxu0 %v1919
        %2008 = vmatprep.subr.mxu0 0.0
        %2009 = vmatpush1.msra.mxu0 %v1920
        %2010 = vmatprep.subr.mxu0 0.0
        %2011 = vmatpush1.msra.mxu0 %v1921
        %2012 = vmatprep.subr.mxu0 0.0
        %2013 = vmatpush1.msra.mxu0 %v1922
        %2014 = vmatprep.subr.mxu0 0.0
        %2015 = vmatpush1.msra.mxu0 %v1923
        %2016 = vmatprep.subr.mxu0 0.0
        %2017 = vmatpush1.msra.mxu0 %v1924
        %2018 = vmatprep.subr.mxu0 0.0
        %2019 = vmatpush1.msra.mxu0 %v1925
        %2020 = vmatprep.subr.mxu0 0.0
        %2021 = vmatpush1.msra.mxu0 %v1926
        %2022 = vmatprep.subr.mxu0 0.0
        %2023 = vmatpush1.msra.mxu0 %v1927
        %2024 = vmatprep.subr.mxu0 0.0
        %2025 = vmatpush1.msra.mxu0 %v1928
        %2026 = vmatprep.subr.mxu0 0.0
        %2027 = vmatpush1.msra.mxu0 %v1929
        %2028 = vmatprep.subr.mxu0 0.0
        %2029 = vmatpush1.msra.mxu0 %v1930
        %2030 = vmatprep.subr.mxu0 0.0
        %2031 = vmatpush1.msra.mxu0 %v1931
        %2032 = vmatprep.subr.mxu0 0.0
        %2033 = vmatpush1.msra.mxu0 %v1932
        %2034 = vmatprep.subr.mxu0 0.0
        %2035 = vmatpush1.msra.mxu0 %v1933
        %2036 = vmatprep.subr.mxu0 0.0
        %2037 = vmatpush1.msra.mxu0 %v1934
        %2038 = vmatprep.subr.mxu0 0.0
        %2039 = vmatpush1.msra.mxu0 %v1935
        %2040 = vmatprep.subr.mxu0 0.0
        %2041 = vmatpush1.msra.mxu0 %v1936
        %2042 = vmatprep.subr.mxu0 0.0
        %2043 = vmatpush1.msra.mxu0 %v1937
        %2044 = vmatprep.subr.mxu0 0.0
        %2045 = vmatpush1.msra.mxu0 %v1938
        %2046 = vmatprep.subr.mxu0 0.0
        %2047 = vmatpush1.msra.mxu0 %v1939
        %2048 = vmatprep.subr.mxu0 0.0
        %2049 = vmatpush1.msra.mxu0 %v1940
        %2050 = vmatprep.subr.mxu0 0.0
        %2051 = vmatpush1.msra.mxu0 %v1941
        %2052 = vmatprep.subr.mxu0 0.0
        %2053 = vmatpush1.msra.mxu0 %v1942
        %2054 = vmatprep.subr.mxu0 0.0
        %2055 = vmatpush1.msra.mxu0 %v1943
        %2056 = vmatprep.subr.mxu0 0.0
        %2057 = vmatpush1.msra.mxu0 %v1944
        %2058 = vmatprep.subr.mxu0 0.0
        %2059 = vmatpush1.msra.mxu0 %v1945
        %2060 = vmatprep.subr.mxu0 0.0
        %2061 = vmatpush1.msra.mxu0 %v1946
        %2062 = vmatprep.mubr.f32.mxu0 %v1909
        %2063 = vmatmul.mubr.f32.gmra.mrb[0].mxu0 %v1907
        %v2064 = vpop.f32.mrb[0].mxu0
        %v2065 = vadd.f32 %v1992, %v2064
        %v2066 = vpop.f32.mrb[0].mxu0
        %2067 = vmatprep.mubr.f32.mxu0 %v1910
        %2068 = vmatmul.mubr.f32.gmra.mrb[0].mxu0 %v1908
        %v2069 = vpop.f32.mrb[0].mxu0
        %v2070 = vadd.f32 %v1992, %v2069
        %v2071 = vpop.f32.mrb[0].mxu0
        %2072 = vdwg.mxu0
        %2073 = vmatprep.subr.mxu0 0.0
        %2074 = vmatpush1.msra.mxu0 %v1947
        %2075 = vmatprep.subr.mxu0 0.0
        %2076 = vmatpush1.msra.mxu0 %v1948
        %2077 = vmatprep.subr.mxu0 0.0
        %2078 = vmatpush1.msra.mxu0 %v1949
        %2079 = vmatprep.subr.mxu0 0.0
        %2080 = vmatpush1.msra.mxu0 %v1950
        %2081 = vmatprep.subr.mxu0 0.0
        %2082 = vmatpush1.msra.mxu0 %v1951
        %2083 = vmatprep.subr.mxu0 0.0
        %2084 = vmatpush1.msra.mxu0 %v1952
        %2085 = vmatprep.subr.mxu0 0.0
        %2086 = vmatpush1.msra.mxu0 %v1953
        %2087 = vmatprep.subr.mxu0 0.0
        %2088 = vmatpush1.msra.mxu0 %v1954
        %2089 = vmatprep.subr.mxu0 0.0
        %2090 = vmatpush1.msra.mxu0 %v1955
        %2091 = vmatprep.subr.mxu0 0.0
        %2092 = vmatpush1.msra.mxu0 %v1956
        %2093 = vmatprep.subr.mxu0 0.0
        %2094 = vmatpush1.msra.mxu0 %v1957
        %2095 = vmatprep.subr.mxu0 0.0
        %2096 = vmatpush1.msra.mxu0 %v1958
        %2097 = vmatprep.subr.mxu0 0.0
        %2098 = vmatpush1.msra.mxu0 %v1959
        %2099 = vmatprep.subr.mxu0 0.0
        %2100 = vmatpush1.msra.mxu0 %v1960
        %2101 = vmatprep.subr.mxu0 0.0
        %2102 = vmatpush1.msra.mxu0 %v1961
        %2103 = vmatprep.subr.mxu0 0.0
        %2104 = vmatpush1.msra.mxu0 %v1962
        %2105 = vmatprep.subr.mxu0 0.0
        %2106 = vmatpush1.msra.mxu0 %v1963
        %2107 = vmatprep.subr.mxu0 0.0
        %2108 = vmatpush1.msra.mxu0 %v1964
        %2109 = vmatprep.subr.mxu0 0.0
        %2110 = vmatpush1.msra.mxu0 %v1965
        %2111 = vmatprep.subr.mxu0 0.0
        %2112 = vmatpush1.msra.mxu0 %v1966
        %2113 = vmatprep.subr.mxu0 0.0
        %2114 = vmatpush1.msra.mxu0 %v1967
        %2115 = vmatprep.subr.mxu0 0.0
        %2116 = vmatpush1.msra.mxu0 %v1968
        %2117 = vmatprep.subr.mxu0 0.0
        %2118 = vmatpush1.msra.mxu0 %v1969
        %2119 = vmatprep.subr.mxu0 0.0
        %2120 = vmatpush1.msra.mxu0 %v1970
        %2121 = vmatprep.subr.mxu0 0.0
        %2122 = vmatpush1.msra.mxu0 %v1971
        %2123 = vmatprep.subr.mxu0 0.0
        %2124 = vmatpush1.msra.mxu0 %v1972
        %2125 = vmatprep.subr.mxu0 0.0
        %2126 = vmatpush1.msra.mxu0 %v1973
        %2127 = vmatprep.subr.mxu0 0.0
        %2128 = vmatpush1.msra.mxu0 %v1974
        %2129 = vmatprep.subr.mxu0 0.0
        %2130 = vmatpush1.msra.mxu0 %v1975
        %2131 = vmatprep.subr.mxu0 0.0
        %2132 = vmatpush1.msra.mxu0 %v1976
        %2133 = vmatprep.subr.mxu0 0.0
        %2134 = vmatpush1.msra.mxu0 %v1977
        %2135 = vmatprep.subr.mxu0 0.0
        %2136 = vmatpush1.msra.mxu0 %v1978
        %2137 = vmatprep.mubr.f32.mxu0 %v1913
        %2138 = vmatmul.mubr.f32.gmra.mrb[0].mxu0 %v1911
        %v2139 = vpop.f32.mrb[0].mxu0
        %v2140 = vadd.f32 %v2065, %v2139
        %v2141 = vpop.f32.mrb[0].mxu0
        %2142 = vmatprep.mubr.f32.mxu0 %v1914
        %2143 = vmatmul.mubr.f32.gmra.mrb[0].mxu0 %v1912
        %v2144 = vpop.f32.mrb[0].mxu0
        %v2145 = vadd.f32 %v2070, %v2144
        %v2146 = vpop.f32.mrb[0].mxu0
        %2147 = vdwg.mxu0
        %2148 = vmatprep.subr.mxu0 0.0
        %2149 = vmatpush1.msra.mxu0 %v1979
        %2150 = vmatprep.subr.mxu0 0.0
        %2151 = vmatpush1.msra.mxu0 %v1980
        %2152 = vmatprep.subr.mxu0 0.0
        %2153 = vmatpush1.msra.mxu0 %v1981
        %2154 = vmatprep.subr.mxu0 0.0
        %2155 = vmatpush1.msra.mxu0 %v1982
        %2156 = vmatprep.subr.mxu0 0.0
        %2157 = vmatpush1.msra.mxu0 %v1983
        %2158 = vmatprep.subr.mxu0 0.0
        %2159 = vmatpush1.msra.mxu0 %v1984
        %2160 = vmatprep.subr.mxu0 0.0
        %2161 = vmatpush1.msra.mxu0 %v1985
        %2162 = vmatprep.subr.mxu0 0.0
        %2163 = vmatpush1.msra.mxu0 %v1986
        %2164 = vmatprep.subr.mxu0 0.0
        %2165 = vmatpush1.msra.mxu0 0.0
        %2166 = vmatprep.subr.mxu0 0.0
        %2167 = vmatpush1.msra.mxu0 0.0
        %2168 = vmatprep.subr.mxu0 0.0
        %2169 = vmatpush1.msra.mxu0 0.0
        %2170 = vmatprep.subr.mxu0 0.0
        %2171 = vmatpush1.msra.mxu0 0.0
        %2172 = vmatprep.subr.mxu0 0.0
        %2173 = vmatpush1.msra.mxu0 0.0
        %2174 = vmatprep.subr.mxu0 0.0
        %2175 = vmatpush1.msra.mxu0 0.0
        %2176 = vmatprep.subr.mxu0 0.0
        %2177 = vmatpush1.msra.mxu0 0.0
        %2178 = vmatprep.subr.mxu0 0.0
        %2179 = vmatpush1.msra.mxu0 0.0
        %2180 = vmatprep.subr.mxu0 0.0
        %2181 = vmatpush1.msra.mxu0 0.0
        %2182 = vmatprep.subr.mxu0 0.0
        %2183 = vmatpush1.msra.mxu0 0.0
        %2184 = vmatprep.subr.mxu0 0.0
        %2185 = vmatpush1.msra.mxu0 0.0
        %2186 = vmatprep.subr.mxu0 0.0
        %2187 = vmatpush1.msra.mxu0 0.0
        %2188 = vmatprep.subr.mxu0 0.0
        %2189 = vmatpush1.msra.mxu0 0.0
        %2190 = vmatprep.subr.mxu0 0.0
        %2191 = vmatpush1.msra.mxu0 0.0
        %2192 = vmatprep.subr.mxu0 0.0
        %2193 = vmatpush1.msra.mxu0 0.0
        %2194 = vmatprep.subr.mxu0 0.0
        %2195 = vmatpush1.msra.mxu0 0.0
        %2196 = vmatprep.subr.mxu0 0.0
        %2197 = vmatpush1.msra.mxu0 0.0
        %2198 = vmatprep.subr.mxu0 0.0
        %2199 = vmatpush1.msra.mxu0 0.0
        %2200 = vmatprep.subr.mxu0 0.0
        %2201 = vmatpush1.msra.mxu0 0.0
        %2202 = vmatprep.subr.mxu0 0.0
        %2203 = vmatpush1.msra.mxu0 0.0
        %2204 = vmatprep.subr.mxu0 0.0
        %2205 = vmatpush1.msra.mxu0 0.0
        %2206 = vmatprep.subr.mxu0 0.0
        %2207 = vmatpush1.msra.mxu0 0.0
        %2208 = vmatprep.subr.mxu0 0.0
        %2209 = vmatpush1.msra.mxu0 0.0
        %2210 = vmatprep.subr.mxu0 0.0
        %2211 = vmatpush1.msra.mxu0 0.0
        %2212 = vmatprep.mubr.f32.mxu0 0.0
        %2213 = vmatmul.mubr.f32.gmra.mrb[0].mxu0 %v1994
        %v2214 = vpop.f32.mrb[0].mxu0
        %v2215 = vadd.f32 %v2140, %v2214
        %v2216 = vpop.f32.mrb[0].mxu0
        %2217 = vmatprep.mubr.f32.mxu0 0.0
        %2218 = vmatmul.mubr.f32.gmra.mrb[0].mxu0 %v1996
        %v2219 = vpop.f32.mrb[0].mxu0
        %v2220 = vadd.f32 %v2145, %v2219
        %v2221 = vpop.f32.mrb[0].mxu0
        %2222 = vdwg.mxu0
        %v2225 = vcombine.high %v2215, %v2215
        %v2226 = vcombine.high %v2220, %v2220
        %2229 = vst [vmem:[%s319] sm:$0xf] %v2215
        %2230 = vst [vmem:[%s319 + $0x4] sm:$0xf] %v2225
        %2231 = vst [vmem:[%s319 + $0x8] sm:$0xf] %v2220
        %2232 = vst [vmem:[%s319 + $0xc] sm:$0xf] %v2226
        %v2233 = vmax.f32 %v2215, 0.0
        %v2234 = vmax.f32 %v2225, 0.0
        %v2235 = vmax.f32 %v2220, 0.0
        %v2236 = vmax.f32 %v2226, 0.0
        %2237 = vst [vmem:[%s326] sm:$0xf] %v2233
        %2238 = vst [vmem:[%s326 + $0x4] sm:$0xf] %v2234
        %2239 = vst [vmem:[%s326 + $0x8] sm:$0xf] %v2235
        %2240 = vst [vmem:[%s326 + $0xc] sm:$0xf] %v2236
        %s2241 = sand.u32 %s147, 1
        %s2242 = scalar_lea.sflag [#allocation3], %s2241
        %s2243 = sand.u32 %s147, 1
        %s2244 = smul.addr %s2243, 256
        %s2245 = scalar_lea.vmem [#allocation2], %s2244
        %s2246 = sand.u32 %s29, 1
        %s2247 = scalar_lea.sflag [#allocation5], %s2246
        %s2248 = sand.u32 %s173, 1
        %s2249 = smul.addr %s2248, 64
        %s2250 = scalar_lea.vmem [#allocation4], %s2249
        %s2251 = sand.u32 %s29, 1
        %s2252 = scalar_lea.sflag [#allocation5], %s2251
        %s2253 = sand.u32 %s199, 1
        %s2254 = smul.addr %s2253, 16
        %s2255 = scalar_lea.vmem [#allocation6], %s2254
        %s2256 = sand.u32 %s225, 1
        %s2257 = scalar_lea.sflag [#allocation8], %s2256
        %s2258 = sand.u32 %s225, 1
        %s2259 = smul.addr %s2258, 16
        %s2260 = scalar_lea.vmem [#allocation7], %s2259
        // Predicated region
        $region41: #{custom_encoder_forward.1} parent=39 // pred_check
          %p2261 = pneg %p157
        $region42: #{custom_encoder_forward.1} parent=39 // pred_check_branch
          %2263 = sbr.rel (%p2261) target = $region44
        $region43: #{custom_encoder_forward.1} parent=39 // pred_region
          %s2265 = ssub.s32 4096, 4096
          %2266 = vsyncadd %s2242, %s2265
          %s2267 = smul.addr %s29, 32
          %s2268 = smul.addr %s2267, 128
          %s2269 = scalar_lea.hbm %s5, %s2268
          %s2270 = sshll.u32 %s2245, 4
          %s2271 = int_to_ptr.vmem [resolvable:$true] %s2270
          %2276 = dma.vmem_to_hbm [thread:$0]  %s2271, 4096, %s2269, %s2242, 128, 128, 8
        $region44: #{custom_encoder_forward.1} parent=39 // pred_fallthru
          _
        // Predicated region
        $region45: #{custom_encoder_forward.1} parent=39 // pred_check
          %p2277 = pneg %p183
        $region46: #{custom_encoder_forward.1} parent=39 // pred_check_branch
          %2279 = sbr.rel (%p2277) target = $region48
        $region47: #{custom_encoder_forward.1} parent=39 // pred_region
          %s2281 = ssub.s32 1024, 1024
          %2282 = vsyncadd %s2247, %s2281
          %s2283 = smul.addr %s29, 8
          %s2284 = smul.addr %s2283, 128
          %s2285 = scalar_lea.hbm %s6, %s2284
          %s2286 = sshll.u32 %s2250, 4
          %s2287 = int_to_ptr.vmem [resolvable:$true] %s2286
          %2292 = dma.vmem_to_hbm [thread:$0]  %s2287, 1024, %s2285, %s2247, 128, 128, 8
        $region48: #{custom_encoder_forward.1} parent=39 // pred_fallthru
          _
        // Predicated region
        $region49: #{custom_encoder_forward.1} parent=39 // pred_check
          %p2293 = pneg %p209
        $region50: #{custom_encoder_forward.1} parent=39 // pred_check_branch
          %2295 = sbr.rel (%p2293) target = $region52
        $region51: #{custom_encoder_forward.1} parent=39 // pred_region
          %s2297 = ssub.s32 256, 256
          %2298 = vsyncadd %s2252, %s2297
          %s2299 = smul.addr %s29, 4
          %s2300 = smul.addr %s2299, 64
          %s2301 = scalar_lea.hbm %s7, %s2300
          %s2302 = sshll.u32 %s2255, 4
          %s2303 = int_to_ptr.vmem [resolvable:$true] %s2302
          %2308 = dma.vmem_to_hbm [thread:$0]  %s2303, 256, %s2301, %s2252, 64, 64, 4
        $region52: #{custom_encoder_forward.1} parent=39 // pred_fallthru
          _
        // Predicated region
        $region53: #{custom_encoder_forward.1} parent=39 // pred_check
          %p2309 = pneg %p235
        $region54: #{custom_encoder_forward.1} parent=39 // pred_check_branch
          %2311 = sbr.rel (%p2309) target = $region56
        $region55: #{custom_encoder_forward.1} parent=39 // pred_region
          %s2313 = ssub.s32 256, 256
          %2314 = vsyncadd %s2257, %s2313
          %s2315 = smul.addr %s29, 4
          %s2316 = smul.addr %s2315, 64
          %s2317 = scalar_lea.hbm %s8, %s2316
          %s2318 = sshll.u32 %s2260, 4
          %s2319 = int_to_ptr.vmem [resolvable:$true] %s2318
          %2324 = dma.vmem_to_hbm [thread:$0]  %s2319, 256, %s2317, %s2257, 64, 64, 4
        $region56: #{custom_encoder_forward.1} parent=39 // pred_fallthru
          _
      $region40: #{custom_encoder_forward.1} parent=5 // pred_fallthru
        _
      %p2325 = scmp.le.s32.totalorder 2, %s24
      // Predicated region
      $region57: #{custom_encoder_forward.1} parent=5 // pred_check
        %p2326 = pneg %p2325
      $region58: #{custom_encoder_forward.1} parent=5 // pred_check_branch
        %2328 = sbr.rel (%p2326) target = $region60
      $region59: #{custom_encoder_forward.1} parent=5 // pred_region
        %s2329 = ssub.s32 %s24, 2
        // Predicated region
        $region61: #{custom_encoder_forward.1} parent=59 // pred_check
          %p2330 = pneg %p163
        $region62: #{custom_encoder_forward.1} parent=59 // pred_check_branch
          %2332 = sbr.rel (%p2330) target = $region64
        $region63: #{custom_encoder_forward.1} parent=59 // pred_region
          %s2333 = sand.u32 %s148, 1
          %s2334 = scalar_lea.sflag [#allocation3], %s2333
          %s2335 = sand.u32 %s148, 1
          %s2336 = smul.addr %s2335, 256
          %s2337 = scalar_lea.vmem [#allocation2], %s2336
          %2338 = dma.done %s2334, 4096
        $region64: #{custom_encoder_forward.1} parent=59 // pred_fallthru
          _
        // Predicated region
        $region65: #{custom_encoder_forward.1} parent=59 // pred_check
          %p2339 = pneg %p189
        $region66: #{custom_encoder_forward.1} parent=59 // pred_check_branch
          %2341 = sbr.rel (%p2339) target = $region68
        $region67: #{custom_encoder_forward.1} parent=59 // pred_region
          %s2342 = sand.u32 %s30, 1
          %s2343 = scalar_lea.sflag [#allocation5], %s2342
          %s2344 = sand.u32 %s174, 1
          %s2345 = smul.addr %s2344, 64
          %s2346 = scalar_lea.vmem [#allocation4], %s2345
          %2347 = dma.done %s2343, 1024
        $region68: #{custom_encoder_forward.1} parent=59 // pred_fallthru
          _
        // Predicated region
        $region69: #{custom_encoder_forward.1} parent=59 // pred_check
          %p2348 = pneg %p215
        $region70: #{custom_encoder_forward.1} parent=59 // pred_check_branch
          %2350 = sbr.rel (%p2348) target = $region72
        $region71: #{custom_encoder_forward.1} parent=59 // pred_region
          %s2351 = sand.u32 %s30, 1
          %s2352 = scalar_lea.sflag [#allocation5], %s2351
          %s2353 = sand.u32 %s200, 1
          %s2354 = smul.addr %s2353, 16
          %s2355 = scalar_lea.vmem [#allocation6], %s2354
          %2356 = dma.done %s2352, 256
        $region72: #{custom_encoder_forward.1} parent=59 // pred_fallthru
          _
        // Predicated region
        $region73: #{custom_encoder_forward.1} parent=59 // pred_check
          %p2357 = pneg %p241
        $region74: #{custom_encoder_forward.1} parent=59 // pred_check_branch
          %2359 = sbr.rel (%p2357) target = $region76
        $region75: #{custom_encoder_forward.1} parent=59 // pred_region
          %s2360 = sand.u32 %s226, 1
          %s2361 = scalar_lea.sflag [#allocation8], %s2360
          %s2362 = sand.u32 %s226, 1
          %s2363 = smul.addr %s2362, 16
          %s2364 = scalar_lea.vmem [#allocation7], %s2363
          %2365 = dma.done %s2361, 256
        $region76: #{custom_encoder_forward.1} parent=59 // pred_fallthru
          _
      $region60: #{custom_encoder_forward.1} parent=5 // pred_fallthru
        _
    $region6: #{custom_encoder_forward.1} parent=1 // loop_footer
      %s28 = sadd.s32 1, %s24
    $region7: #{custom_encoder_forward.1} parent=1 // loop_footer_branch
      %23 = sbr.rel target = $region3
    $region8: #{custom_encoder_forward.1} parent=1 // loop_exit
      _
    %2366 = vsyncpa [#allocation3], 1
    %s2367 = scalar_lea.sflag [#allocation3], 1
    %2368 = vsyncpa %s2367, 1
    %2369 = vsyncpa [#allocation5], 1
    %s2370 = scalar_lea.sflag [#allocation5], 1
    %2371 = vsyncpa %s2370, 1
    %2372 = vsyncpa [#allocation8], 1
    %s2373 = scalar_lea.sflag [#allocation8], 1
    %2374 = vsyncpa %s2373, 1

</llo_original>
